<compile_context>
chip_gen: v7x
topology: tpu7x:2x2x1
jax: 0.10.0
libtpu: 0.0.40
codegen_flags: <defaults>
</compile_context>

<pallas_src>
import functools
import math

import jax
import jax.numpy as jnp
from jax.experimental import pallas as pl
from jax.experimental.pallas import tpu as pltpu


def _round_up(x, m):
    return ((x + m - 1) // m) * m


def _xavier_uniform(key, fan_in, fan_out, gain=1.0, dtype=jnp.float32):
    # Matches torch.nn.init.xavier_uniform_(weight, gain=1):
    # bound = gain * sqrt(6 / (fan_in + fan_out)), uniform(-bound, bound).
    bound = gain * math.sqrt(6.0 / (fan_in + fan_out))
    # torch weight is (out, in); we sample (in, out) directly — same distribution.
    return jax.random.uniform(key, (fan_in, fan_out), dtype=dtype,
                              minval=-bound, maxval=bound)


def init_dqn_params(num_features, num_actions, seed=0):
    dims = [num_features, 50, 100, 200, 400, num_actions]
    keys = jax.random.split(jax.random.PRNGKey(seed), len(dims) - 1)
    params = []
    for k, fin, fout in zip(keys, dims[:-1], dims[1:]):
        w = _xavier_uniform(k, fin, fout)
        b = jnp.zeros((1, fout), dtype=jnp.float32)  # constant_(bias, 0)
        params.append((w, b))
    return params


def prepare_dqn_params(params):
    """One-time prep (call once per parameter update, NOT per forward call).

    Zero-pads each layer's output dim (and the input dim of layers 2..5, which
    must match the previous layer's padded output) up to multiples of 128 and
    casts the weights to bf16 (MXU-native).  Layer 1 keeps its real input dim
    so x can be streamed unpadded.  Biases stay f32 (bias add / ReLU run on the
    f32 accumulator).  Zero rows/cols + ReLU(0)=0 keep the real output columns
    identical to the unpadded computation.  Returns a flat tuple of 10 arrays.
    """
    prepared = []
    for idx, (w, b) in enumerate(params):
        fin, fout = w.shape
        fin_p = fin if idx == 0 else _round_up(fin, 128)
        fout_p = _round_up(fout, 128)
        w_p = jnp.zeros((fin_p, fout_p), jnp.float32).at[:fin, :fout].set(w)
        b_p = jnp.zeros((1, fout_p), jnp.float32).at[:, :fout].set(b)
        prepared.append((w_p.astype(jnp.bfloat16), b_p))
    return tuple(p for wb in prepared for p in wb)


def _dqn_kernel(x_ref,
                w1_ref, b1_ref, w2_ref, b2_ref, w3_ref, b3_ref,
                w4_ref, b4_ref, w5_ref, b5_ref,
                o_ref):
    # Fused forward: relu(x@W1+b1) -> ... -> relu(.@W4+b4) -> .@W5+b5
    # bf16 operands into the MXU, f32 accumulation, f32 bias/ReLU, bf16 recast.
    def layer_relu(h, w_ref, b_ref):
        acc = jnp.dot(h, w_ref[...], preferred_element_type=jnp.float32) + b_ref[...]
        return jnp.maximum(acc, 0.0).astype(jnp.bfloat16)

    h = x_ref[...].astype(jnp.bfloat16)      # in-kernel cast; x streamed raw f32
    h = layer_relu(h, w1_ref, b1_ref)
    h = layer_relu(h, w2_ref, b2_ref)
    h = layer_relu(h, w3_ref, b3_ref)
    h = layer_relu(h, w4_ref, b4_ref)
    o_ref[...] = (
        jnp.dot(h, w5_ref[...], preferred_element_type=jnp.float32) + b5_ref[...]
    ).astype(o_ref.dtype)


@functools.partial(jax.jit,
                   static_argnames=("num_actions", "max_batch_tile", "core_parallel"))
def dqn_forward(x, flat_params, *, num_actions, max_batch_tile=1024,
                core_parallel=False):
    """x: (B, num_features) f32.  flat_params: output of prepare_dqn_params()."""
    B, F = x.shape
    A_pad = flat_params[-2].shape[1]          # padded num_actions (>=128)

    # Fat tiles (multiple of 16 rows): whole batch in 1 step when it fits,
    # otherwise few fat steps.  Pallas masks the boundary block, so no batch
    # padding of x is needed.
    batch_tile = min(_round_up(B, 16), _round_up(max_batch_tile, 16))
    grid = (pl.cdiv(B, batch_tile),)

    def const_spec(arr):
        # Constant block index -> weight/bias stays VMEM-resident across steps.
        return pl.BlockSpec(arr.shape, lambda i: (0, 0))

    in_specs = [pl.BlockSpec((batch_tile, F), lambda i: (i, 0))]   # F = full dim
    in_specs += [const_spec(p) for p in flat_params]

    # On v7x with large batches, core_parallel=True shards the batch grid axis
    # across both TensorCores.
    sem = pltpu.CORE_PARALLEL if core_parallel else pltpu.PARALLEL

    out_p = pl.pallas_call(
        _dqn_kernel,
        out_shape=jax.ShapeDtypeStruct((B, A_pad), jnp.float32),
        grid_spec=pltpu.PrefetchScalarGridSpec(
            num_scalar_prefetch=0,
            grid=grid,
            in_specs=in_specs,
            out_specs=pl.BlockSpec((batch_tile, A_pad), lambda i: (i, 0)),
        ),
        compiler_params=pltpu.CompilerParams(dimension_semantics=(sem,)),
    )(x, *flat_params)

    # Lane-dense (tile, 128) store in-kernel; the narrow num_actions slice
    # fuses here inside the same jit (no extra HBM pass).
    return out_p[:, :num_actions]


def dqn_forward_ref(x, params):
    # Pure f32 reference (original PyTorch semantics).
    h = x
    for i, (w, b) in enumerate(params):
        h = h @ w + b
        if i < len(params) - 1:
            h = jnp.maximum(h, 0.0)
    return h


def dqn_forward_ref_bf16(x, params):
    # Mirrors the kernel's numerics: bf16 operands, f32 accumulate, f32 bias/ReLU.
    h = x.astype(jnp.bfloat16)
    for i, (w, b) in enumerate(params):
        h = jnp.dot(h, w.astype(jnp.bfloat16),
                    preferred_element_type=jnp.float32) + b
        if i < len(params) - 1:
            h = jnp.maximum(h, 0.0).astype(jnp.bfloat16)
    return h


if __name__ == "__main__":
    batch = 256
    num_features = 32
    num_actions = 4

    key = jax.random.PRNGKey(0)
    x = jax.random.normal(key, (batch, num_features), dtype=jnp.float32)

    params = init_dqn_params(num_features, num_actions, seed=0)
    flat_params = prepare_dqn_params(params)   # hoisted: pad/cast weights once

    out = jax.block_until_ready(dqn_forward(x, flat_params, num_actions=num_actions))
    assert out.shape == (batch, num_actions)

    ref_bf16 = dqn_forward_ref_bf16(x, params)   # same quantization as kernel
    ref_f32 = dqn_forward_ref(x, params)         # original f32 semantics
    assert jnp.allclose(out, ref_bf16, atol=2e-3, rtol=2e-3), "mismatch vs bf16 reference"
    assert jnp.allclose(out, ref_f32, atol=5e-2, rtol=5e-2), "mismatch vs f32 reference"

    print("KERNEL_OK")
</pallas_src>

<mosaic_0001>
module attributes {stable_mosaic.version = 11 : i64} {
  func.func @_dqn_kernel(%arg0: i32, %arg1: memref<256x32xf32, #tpu.memory_space<vmem>>, %arg2: memref<32x128xbf16, #tpu.memory_space<vmem>>, %arg3: memref<1x128xf32, #tpu.memory_space<vmem>>, %arg4: memref<128x128xbf16, #tpu.memory_space<vmem>>, %arg5: memref<1x128xf32, #tpu.memory_space<vmem>>, %arg6: memref<128x256xbf16, #tpu.memory_space<vmem>>, %arg7: memref<1x256xf32, #tpu.memory_space<vmem>>, %arg8: memref<256x512xbf16, #tpu.memory_space<vmem>>, %arg9: memref<1x512xf32, #tpu.memory_space<vmem>>, %arg10: memref<512x128xbf16, #tpu.memory_space<vmem>>, %arg11: memref<1x128xf32, #tpu.memory_space<vmem>>, %arg12: memref<256x128xf32, #tpu.memory_space<vmem>>) attributes {dimension_semantics = [#tpu.dimension_semantics<parallel>], iteration_bounds = array<i64: 1>, scalar_prefetch = 0 : i64, scratch_operands = 0 : i64, tpu.core_type = #tpu.core_type<tc>, window_params = [{transform_indices = @transform_0, window_bounds = array<i64: 256, 32>}, {pipeline_mode = #tpu.pipeline_mode<synchronous>, transform_indices = @transform_1, window_bounds = array<i64: 32, 128>}, {pipeline_mode = #tpu.pipeline_mode<synchronous>, transform_indices = @transform_2, window_bounds = array<i64: 1, 128>}, {pipeline_mode = #tpu.pipeline_mode<synchronous>, transform_indices = @transform_3, window_bounds = array<i64: 128, 128>}, {pipeline_mode = #tpu.pipeline_mode<synchronous>, transform_indices = @transform_4, window_bounds = array<i64: 1, 128>}, {pipeline_mode = #tpu.pipeline_mode<synchronous>, transform_indices = @transform_5, window_bounds = array<i64: 128, 256>}, {pipeline_mode = #tpu.pipeline_mode<synchronous>, transform_indices = @transform_6, window_bounds = array<i64: 1, 256>}, {pipeline_mode = #tpu.pipeline_mode<synchronous>, transform_indices = @transform_7, window_bounds = array<i64: 256, 512>}, {pipeline_mode = #tpu.pipeline_mode<synchronous>, transform_indices = @transform_8, window_bounds = array<i64: 1, 512>}, {pipeline_mode = #tpu.pipeline_mode<synchronous>, transform_indices = @transform_9, window_bounds = array<i64: 512, 128>}, {pipeline_mode = #tpu.pipeline_mode<synchronous>, transform_indices = @transform_10, window_bounds = array<i64: 1, 128>}, {transform_indices = @transform_11, window_bounds = array<i64: 256, 128>}]} {
    %c0 = arith.constant 0 : index
    %c0_0 = arith.constant 0 : index
    %0 = vector.load %arg1[%c0, %c0_0] : memref<256x32xf32, #tpu.memory_space<vmem>>, vector<256x32xf32>
    %1 = arith.truncf %0 : vector<256x32xf32> to vector<256x32xbf16>
    %c0_1 = arith.constant 0 : index
    %c0_2 = arith.constant 0 : index
    %2 = vector.load %arg2[%c0_1, %c0_2] : memref<32x128xbf16, #tpu.memory_space<vmem>>, vector<32x128xbf16>
    %cst = arith.constant dense<0.000000e+00> : vector<256x128xf32>
    %3 = tpu.matmul %1, %2, %cst {dimension_numbers = #tpu.dot_dimension_numbers<[1], [0], [0], [1], [0, 0, 1, 1], [], []>} : vector<256x32xbf16>, vector<32x128xbf16>, vector<256x128xf32> -> vector<256x128xf32>
    %c0_3 = arith.constant 0 : index
    %c0_4 = arith.constant 0 : index
    %4 = vector.load %arg3[%c0_3, %c0_4] : memref<1x128xf32, #tpu.memory_space<vmem>>, vector<1x128xf32>
    %5 = vector.broadcast %4 : vector<1x128xf32> to vector<256x128xf32>
    %6 = arith.addf %3, %5 : vector<256x128xf32>
    %cst_5 = arith.constant 0.000000e+00 : f32
    %7 = vector.broadcast %cst_5 : f32 to vector<256x128xf32>
    %8 = arith.maximumf %6, %7 : vector<256x128xf32>
    %9 = arith.truncf %8 : vector<256x128xf32> to vector<256x128xbf16>
    %c0_6 = arith.constant 0 : index
    %c0_7 = arith.constant 0 : index
    %10 = vector.load %arg4[%c0_6, %c0_7] : memref<128x128xbf16, #tpu.memory_space<vmem>>, vector<128x128xbf16>
    %cst_8 = arith.constant dense<0.000000e+00> : vector<256x128xf32>
    %11 = tpu.matmul %9, %10, %cst_8 {dimension_numbers = #tpu.dot_dimension_numbers<[1], [0], [0], [1], [0, 0, 1, 1], [], []>} : vector<256x128xbf16>, vector<128x128xbf16>, vector<256x128xf32> -> vector<256x128xf32>
    %c0_9 = arith.constant 0 : index
    %c0_10 = arith.constant 0 : index
    %12 = vector.load %arg5[%c0_9, %c0_10] : memref<1x128xf32, #tpu.memory_space<vmem>>, vector<1x128xf32>
    %13 = vector.broadcast %12 : vector<1x128xf32> to vector<256x128xf32>
    %14 = arith.addf %11, %13 : vector<256x128xf32>
    %cst_11 = arith.constant 0.000000e+00 : f32
    %15 = vector.broadcast %cst_11 : f32 to vector<256x128xf32>
    %16 = arith.maximumf %14, %15 : vector<256x128xf32>
    %17 = arith.truncf %16 : vector<256x128xf32> to vector<256x128xbf16>
    %c0_12 = arith.constant 0 : index
    %c0_13 = arith.constant 0 : index
    %18 = vector.load %arg6[%c0_12, %c0_13] : memref<128x256xbf16, #tpu.memory_space<vmem>>, vector<128x256xbf16>
    %cst_14 = arith.constant dense<0.000000e+00> : vector<256x256xf32>
    %19 = tpu.matmul %17, %18, %cst_14 {dimension_numbers = #tpu.dot_dimension_numbers<[1], [0], [0], [1], [0, 0, 1, 1], [], []>} : vector<256x128xbf16>, vector<128x256xbf16>, vector<256x256xf32> -> vector<256x256xf32>
    %c0_15 = arith.constant 0 : index
    %c0_16 = arith.constant 0 : index
    %20 = vector.load %arg7[%c0_15, %c0_16] : memref<1x256xf32, #tpu.memory_space<vmem>>, vector<1x256xf32>
    %21 = vector.broadcast %20 : vector<1x256xf32> to vector<256x256xf32>
    %22 = arith.addf %19, %21 : vector<256x256xf32>
    %cst_17 = arith.constant 0.000000e+00 : f32
    %23 = vector.broadcast %cst_17 : f32 to vector<256x256xf32>
    %24 = arith.maximumf %22, %23 : vector<256x256xf32>
    %25 = arith.truncf %24 : vector<256x256xf32> to vector<256x256xbf16>
    %c0_18 = arith.constant 0 : index
    %c0_19 = arith.constant 0 : index
    %26 = vector.load %arg8[%c0_18, %c0_19] : memref<256x512xbf16, #tpu.memory_space<vmem>>, vector<256x512xbf16>
    %cst_20 = arith.constant dense<0.000000e+00> : vector<256x512xf32>
    %27 = tpu.matmul %25, %26, %cst_20 {dimension_numbers = #tpu.dot_dimension_numbers<[1], [0], [0], [1], [0, 0, 1, 1], [], []>} : vector<256x256xbf16>, vector<256x512xbf16>, vector<256x512xf32> -> vector<256x512xf32>
    %c0_21 = arith.constant 0 : index
    %c0_22 = arith.constant 0 : index
    %28 = vector.load %arg9[%c0_21, %c0_22] : memref<1x512xf32, #tpu.memory_space<vmem>>, vector<1x512xf32>
    %29 = vector.broadcast %28 : vector<1x512xf32> to vector<256x512xf32>
    %30 = arith.addf %27, %29 : vector<256x512xf32>
    %cst_23 = arith.constant 0.000000e+00 : f32
    %31 = vector.broadcast %cst_23 : f32 to vector<256x512xf32>
    %32 = arith.maximumf %30, %31 : vector<256x512xf32>
    %33 = arith.truncf %32 : vector<256x512xf32> to vector<256x512xbf16>
    %c0_24 = arith.constant 0 : index
    %c0_25 = arith.constant 0 : index
    %34 = vector.load %arg10[%c0_24, %c0_25] : memref<512x128xbf16, #tpu.memory_space<vmem>>, vector<512x128xbf16>
    %cst_26 = arith.constant dense<0.000000e+00> : vector<256x128xf32>
    %35 = tpu.matmul %33, %34, %cst_26 {dimension_numbers = #tpu.dot_dimension_numbers<[1], [0], [0], [1], [0, 0, 1, 1], [], []>} : vector<256x512xbf16>, vector<512x128xbf16>, vector<256x128xf32> -> vector<256x128xf32>
    %c0_27 = arith.constant 0 : index
    %c0_28 = arith.constant 0 : index
    %36 = vector.load %arg11[%c0_27, %c0_28] : memref<1x128xf32, #tpu.memory_space<vmem>>, vector<1x128xf32>
    %37 = vector.broadcast %36 : vector<1x128xf32> to vector<256x128xf32>
    %38 = arith.addf %35, %37 : vector<256x128xf32>
    %c0_29 = arith.constant 0 : index
    %c0_30 = arith.constant 0 : index
    %39 = vector.load %arg12[%c0_29, %c0_30] : memref<256x128xf32, #tpu.memory_space<vmem>>, vector<256x128xf32>
    tpu.vector_store %arg12[%c0_29, %c0_30], %38 {strides = array<i32>} : memref<256x128xf32, #tpu.memory_space<vmem>>, vector<256x128xf32>,
    return
  }
  func.func @transform_0(%arg0: i32) -> (i32, i32) {
    %c0_i32 = arith.constant 0 : i32
    %c0_i32_0 = arith.constant 0 : i32
    return %arg0, %c0_i32 : i32, i32
  }
  func.func @transform_1(%arg0: i32) -> (i32, i32) {
    %c0_i32 = arith.constant 0 : i32
    %c0_i32_0 = arith.constant 0 : i32
    %c0_i32_1 = arith.constant 0 : i32
    return %c0_i32, %c0_i32_0 : i32, i32
  }
  func.func @transform_2(%arg0: i32) -> (i32, i32) {
    %c0_i32 = arith.constant 0 : i32
    %c0_i32_0 = arith.constant 0 : i32
    %c0_i32_1 = arith.constant 0 : i32
    return %c0_i32, %c0_i32_0 : i32, i32
  }
  func.func @transform_3(%arg0: i32) -> (i32, i32) {
    %c0_i32 = arith.constant 0 : i32
    %c0_i32_0 = arith.constant 0 : i32
    %c0_i32_1 = arith.constant 0 : i32
    return %c0_i32, %c0_i32_0 : i32, i32
  }
  func.func @transform_4(%arg0: i32) -> (i32, i32) {
    %c0_i32 = arith.constant 0 : i32
    %c0_i32_0 = arith.constant 0 : i32
    %c0_i32_1 = arith.constant 0 : i32
    return %c0_i32, %c0_i32_0 : i32, i32
  }
  func.func @transform_5(%arg0: i32) -> (i32, i32) {
    %c0_i32 = arith.constant 0 : i32
    %c0_i32_0 = arith.constant 0 : i32
    %c0_i32_1 = arith.constant 0 : i32
    return %c0_i32, %c0_i32_0 : i32, i32
  }
  func.func @transform_6(%arg0: i32) -> (i32, i32) {
    %c0_i32 = arith.constant 0 : i32
    %c0_i32_0 = arith.constant 0 : i32
    %c0_i32_1 = arith.constant 0 : i32
    return %c0_i32, %c0_i32_0 : i32, i32
  }
  func.func @transform_7(%arg0: i32) -> (i32, i32) {
    %c0_i32 = arith.constant 0 : i32
    %c0_i32_0 = arith.constant 0 : i32
    %c0_i32_1 = arith.constant 0 : i32
    return %c0_i32, %c0_i32_0 : i32, i32
  }
  func.func @transform_8(%arg0: i32) -> (i32, i32) {
    %c0_i32 = arith.constant 0 : i32
    %c0_i32_0 = arith.constant 0 : i32
    %c0_i32_1 = arith.constant 0 : i32
    return %c0_i32, %c0_i32_0 : i32, i32
  }
  func.func @transform_9(%arg0: i32) -> (i32, i32) {
    %c0_i32 = arith.constant 0 : i32
    %c0_i32_0 = arith.constant 0 : i32
    %c0_i32_1 = arith.constant 0 : i32
    return %c0_i32, %c0_i32_0 : i32, i32
  }
  func.func @transform_10(%arg0: i32) -> (i32, i32) {
    %c0_i32 = arith.constant 0 : i32
    %c0_i32_0 = arith.constant 0 : i32
    %c0_i32_1 = arith.constant 0 : i32
    return %c0_i32, %c0_i32_0 : i32, i32
  }
  func.func @transform_11(%arg0: i32) -> (i32, i32) {
    %c0_i32 = arith.constant 0 : i32
    %c0_i32_0 = arith.constant 0 : i32
    return %arg0, %c0_i32 : i32, i32
  }
}

</mosaic_0001>

<llo_original>
// kernel: dqn_forward.1
$region0: #{dqn_forward.1}
  #allocation0 [shape = 'u32[]', space=smem, size = 0x4, offset = 0x4, fixed_abs, tag = 'smem constant byte address 0x4 - core index']
  #allocation1 [shape = 'u32[144,128]{1,0:T(1,128)}', space=vmem, size = 0x12000, scoped, tag = 'internal scratch']
  %s0 = inlined_call_operand.vmem [shape: f32[256,32], index: 0, kind: input, shape index: {}]
  %s1 = inlined_call_operand.vmem [shape: bf16[32,128], index: 1, kind: input, shape index: {}]
  %s2 = inlined_call_operand.vmem [shape: f32[1,128], index: 2, kind: input, shape index: {}]
  %s3 = inlined_call_operand.vmem [shape: bf16[128,128], index: 3, kind: input, shape index: {}]
  %s4 = inlined_call_operand.vmem [shape: f32[1,128], index: 4, kind: input, shape index: {}]
  %s5 = inlined_call_operand.hbm [shape: bf16[128,256], index: 5, kind: input, shape index: {}]
  %s6 = inlined_call_operand.vmem [shape: f32[1,256], index: 6, kind: input, shape index: {}]
  %s7 = inlined_call_operand.hbm [shape: bf16[256,512], index: 7, kind: input, shape index: {}]
  %s8 = inlined_call_operand.vmem [shape: f32[1,512], index: 8, kind: input, shape index: {}]
  %s9 = inlined_call_operand.vmem [shape: bf16[512,128], index: 9, kind: input, shape index: {}]
  %s10 = inlined_call_operand.vmem [shape: f32[1,128], index: 10, kind: input, shape index: {}]
  %s11 = inlined_call_operand.vmem [shape: f32[256,128], index: 11, kind: output, shape index: {}]
  %s12 = sld [smem:[#allocation0]]
  $region62: #{dqn_forward.1} parent=0
    _
  %s14 = ssub.s32 1, %s12
  %s15 = scalar_select 0, %s14, %s12
  $region1: #{dqn_forward.1} parent=0
    #allocation2 [shape = 'u8[65536]{0}', space=vmem, size = 0x10000, scoped, tag = 'input window, operand 5, single buffered']
    #allocation3 [shape = 's32[1]{0}', space=sflag, size = 0x4, scoped, tag = 'scoped memory for dqn_forward.1']
    #allocation4 [shape = 'u8[262144]{0}', space=vmem, size = 0x40000, scoped, tag = 'input window, operand 7, single buffered']
    #allocation5 [shape = 's32[1]{0}', space=sflag, size = 0x4, scoped, tag = 'scoped memory for dqn_forward.1']
    %16 = vsyncpa [#allocation3], 0
    %17 = vsyncpa [#allocation5], 0
    // Predicated region
    $region2: #{dqn_forward.1} parent=1 // pred_check
      _
    $region3: #{dqn_forward.1} parent=1 // pred_check_branch
      %19 = sbr.rel (0) target = $region5
    $region4: #{dqn_forward.1} parent=1 // pred_region
      _
    $region5: #{dqn_forward.1} parent=1 // pred_fallthru
      _
    // Predicated region
    $region6: #{dqn_forward.1} parent=1 // pred_check
      _
    $region7: #{dqn_forward.1} parent=1 // pred_check_branch
      %21 = sbr.rel (0) target = $region9
    $region8: #{dqn_forward.1} parent=1 // pred_region
      _
    $region9: #{dqn_forward.1} parent=1 // pred_fallthru
      _
    // Predicated region
    $region10: #{dqn_forward.1} parent=1 // pred_check
      _
    $region11: #{dqn_forward.1} parent=1 // pred_check_branch
      %23 = sbr.rel (0) target = $region13
    $region12: #{dqn_forward.1} parent=1 // pred_region
      _
    $region13: #{dqn_forward.1} parent=1 // pred_fallthru
      _
    // Predicated region
    $region14: #{dqn_forward.1} parent=1 // pred_check
      _
    $region15: #{dqn_forward.1} parent=1 // pred_check_branch
      %25 = sbr.rel (0) target = $region17
    $region16: #{dqn_forward.1} parent=1 // pred_region
      _
    $region17: #{dqn_forward.1} parent=1 // pred_fallthru
      _
    // Predicated region
    $region18: #{dqn_forward.1} parent=1 // pred_check
      _
    $region19: #{dqn_forward.1} parent=1 // pred_check_branch
      %27 = sbr.rel (0) target = $region21
    $region20: #{dqn_forward.1} parent=1 // pred_region
      _
    $region21: #{dqn_forward.1} parent=1 // pred_fallthru
      _
    // Predicated region
    $region22: #{dqn_forward.1} parent=1 // pred_check
      _
    $region23: #{dqn_forward.1} parent=1 // pred_check_branch
      %29 = sbr.rel (0) target = $region25
    $region24: #{dqn_forward.1} parent=1 // pred_region
      %s31 = ssub.s32 2048, 2048
      %32 = vsyncadd [#allocation3], %s31
      %s33 = sshll.u32 [#allocation2], 4
      %s34 = int_to_ptr.vmem [resolvable:$true] %s33
      %39 = dma.hbm_to_vmem [thread:$0]  %s5, 2048, %s34, [#allocation3], 128, 128, 8
    $region25: #{dqn_forward.1} parent=1 // pred_fallthru
      _
    // Predicated region
    $region26: #{dqn_forward.1} parent=1 // pred_check
      _
    $region27: #{dqn_forward.1} parent=1 // pred_check_branch
      %41 = sbr.rel (0) target = $region29
    $region28: #{dqn_forward.1} parent=1 // pred_region
      _
    $region29: #{dqn_forward.1} parent=1 // pred_fallthru
      _
    // Predicated region
    $region30: #{dqn_forward.1} parent=1 // pred_check
      _
    $region31: #{dqn_forward.1} parent=1 // pred_check_branch
      %43 = sbr.rel (0) target = $region33
    $region32: #{dqn_forward.1} parent=1 // pred_region
      %s45 = ssub.s32 8192, 8192
      %46 = vsyncadd [#allocation5], %s45
      %s47 = sshll.u32 [#allocation4], 4
      %s48 = int_to_ptr.vmem [resolvable:$true] %s47
      %53 = dma.hbm_to_vmem [thread:$0]  %s7, 8192, %s48, [#allocation5], 256, 256, 16
    $region33: #{dqn_forward.1} parent=1 // pred_fallthru
      _
    // Predicated region
    $region34: #{dqn_forward.1} parent=1 // pred_check
      _
    $region35: #{dqn_forward.1} parent=1 // pred_check_branch
      %55 = sbr.rel (0) target = $region37
    $region36: #{dqn_forward.1} parent=1 // pred_region
      _
    $region37: #{dqn_forward.1} parent=1 // pred_fallthru
      _
    // Predicated region
    $region38: #{dqn_forward.1} parent=1 // pred_check
      _
    $region39: #{dqn_forward.1} parent=1 // pred_check_branch
      %57 = sbr.rel (0) target = $region41
    $region40: #{dqn_forward.1} parent=1 // pred_region
      _
    $region41: #{dqn_forward.1} parent=1 // pred_fallthru
      _
    // Predicated region
    $region42: #{dqn_forward.1} parent=1 // pred_check
      _
    $region43: #{dqn_forward.1} parent=1 // pred_check_branch
      %59 = sbr.rel (0) target = $region45
    $region44: #{dqn_forward.1} parent=1 // pred_region
      _
    $region45: #{dqn_forward.1} parent=1 // pred_fallthru
      _
    // Predicated region
    $region46: #{dqn_forward.1} parent=1 // pred_check
      _
    $region47: #{dqn_forward.1} parent=1 // pred_check_branch
      %61 = sbr.rel (0) target = $region49
    $region48: #{dqn_forward.1} parent=1 // pred_region
      %62 = dma.done [#allocation3], 2048
    $region49: #{dqn_forward.1} parent=1 // pred_fallthru
      _
    // Predicated region
    $region50: #{dqn_forward.1} parent=1 // pred_check
      _
    $region51: #{dqn_forward.1} parent=1 // pred_check_branch
      %64 = sbr.rel (0) target = $region53
    $region52: #{dqn_forward.1} parent=1 // pred_region
      %65 = dma.done [#allocation5], 8192
    $region53: #{dqn_forward.1} parent=1 // pred_fallthru
      _
    %v67 = vld [vmem:[%s0] sm:$0xff]
    %v68 = vld [vmem:[%s0 + $0x8] sm:$0xff]
    %v69 = vld [vmem:[%s0 + $0x10] sm:$0xff]
    %v70 = vld [vmem:[%s0 + $0x18] sm:$0xff]
    %v71 = vld [vmem:[%s0 + $0x20] sm:$0xff]
    %v72 = vld [vmem:[%s0 + $0x28] sm:$0xff]
    %v73 = vld [vmem:[%s0 + $0x30] sm:$0xff]
    %v74 = vld [vmem:[%s0 + $0x38] sm:$0xff]
    %v75 = vld [vmem:[%s0 + $0x40] sm:$0xff]
    %v76 = vld [vmem:[%s0 + $0x48] sm:$0xff]
    %v77 = vld [vmem:[%s0 + $0x50] sm:$0xff]
    %v78 = vld [vmem:[%s0 + $0x58] sm:$0xff]
    %v79 = vld [vmem:[%s0 + $0x60] sm:$0xff]
    %v80 = vld [vmem:[%s0 + $0x68] sm:$0xff]
    %v81 = vld [vmem:[%s0 + $0x70] sm:$0xff]
    %v82 = vld [vmem:[%s0 + $0x78] sm:$0xff]
    %v83 = vld [vmem:[%s0 + $0x80] sm:$0xff]
    %v84 = vld [vmem:[%s0 + $0x88] sm:$0xff]
    %v85 = vld [vmem:[%s0 + $0x90] sm:$0xff]
    %v86 = vld [vmem:[%s0 + $0x98] sm:$0xff]
    %v87 = vld [vmem:[%s0 + $0xa0] sm:$0xff]
    %v88 = vld [vmem:[%s0 + $0xa8] sm:$0xff]
    %v89 = vld [vmem:[%s0 + $0xb0] sm:$0xff]
    %v90 = vld [vmem:[%s0 + $0xb8] sm:$0xff]
    %v91 = vld [vmem:[%s0 + $0xc0] sm:$0xff]
    %v92 = vld [vmem:[%s0 + $0xc8] sm:$0xff]
    %v93 = vld [vmem:[%s0 + $0xd0] sm:$0xff]
    %v94 = vld [vmem:[%s0 + $0xd8] sm:$0xff]
    %v95 = vld [vmem:[%s0 + $0xe0] sm:$0xff]
    %v96 = vld [vmem:[%s0 + $0xe8] sm:$0xff]
    %v97 = vld [vmem:[%s0 + $0xf0] sm:$0xff]
    %v98 = vld [vmem:[%s0 + $0xf8] sm:$0xff]
    %v99 = vpack.c.bf16 %v68, %v67
    %v100 = vpack.c.bf16 %v70, %v69
    %v101 = vpack.c.bf16 %v72, %v71
    %v102 = vpack.c.bf16 %v74, %v73
    %v103 = vpack.c.bf16 %v76, %v75
    %v104 = vpack.c.bf16 %v78, %v77
    %v105 = vpack.c.bf16 %v80, %v79
    %v106 = vpack.c.bf16 %v82, %v81
    %v107 = vpack.c.bf16 %v84, %v83
    %v108 = vpack.c.bf16 %v86, %v85
    %v109 = vpack.c.bf16 %v88, %v87
    %v110 = vpack.c.bf16 %v90, %v89
    %v111 = vpack.c.bf16 %v92, %v91
    %v112 = vpack.c.bf16 %v94, %v93
    %v113 = vpack.c.bf16 %v96, %v95
    %v114 = vpack.c.bf16 %v98, %v97
    %v115 = vld [vmem:[%s1] sm:$0xf]
    %v116 = vld [vmem:[%s1 + $0x4] sm:$0xf]
    %v117 = vld [vmem:[%s1 + $0x8] sm:$0xf]
    %v118 = vld [vmem:[%s1 + $0xc] sm:$0xf]
    %v119 = vld [vmem:[%s2] sm:$0x1]
    %v121 = vlaneseq
    %v122 = vshrl.u32 %v121, 7
    %v123 = vsub.s32 0, %v122
    %v124 = vrot.slane %v119, %v123
    %v130 = vunpack.c.l.b16 %v115
    %v131 = vunpack.c.l.b16 %v116
    %v132 = vunpack.c.l.b16 %v117
    %v133 = vunpack.c.l.b16 %v118
    %v134 = vpack.c.b16 %v131, %v130
    %v135 = vpack.c.b16 %v133, %v132
    %vm138 = vcmask 261120
    %v140 = vsel %vm138, %v99, 0
    %v143 = vsel %vm138, %v100, 0
    %v146 = vsel %vm138, %v101, 0
    %v149 = vsel %vm138, %v102, 0
    %v152 = vsel %vm138, %v103, 0
    %v155 = vsel %vm138, %v104, 0
    %v158 = vsel %vm138, %v105, 0
    %v161 = vsel %vm138, %v106, 0
    %v164 = vsel %vm138, %v107, 0
    %v167 = vsel %vm138, %v108, 0
    %v170 = vsel %vm138, %v109, 0
    %v173 = vsel %vm138, %v110, 0
    %v176 = vsel %vm138, %v111, 0
    %v179 = vsel %vm138, %v112, 0
    %v182 = vsel %vm138, %v113, 0
    %v185 = vsel %vm138, %v114, 0
    %187 = vmatprep.subr.bf16.mxu0 0
    %188 = vmatpush1.bf16.msra.mxu0 %v134
    %189 = vmatprep.subr.bf16.mxu0 0
    %190 = vmatpush1.bf16.msra.mxu0 %v135
    %191 = vmatprep.subr.bf16.mxu0 0
    %192 = vmatpush1.bf16.msra.mxu0 0
    %193 = vmatprep.subr.bf16.mxu0 0
    %194 = vmatpush1.bf16.msra.mxu0 0
    %195 = vmatprep.subr.bf16.mxu0 0
    %196 = vmatpush1.bf16.msra.mxu0 0
    %197 = vmatprep.subr.bf16.mxu0 0
    %198 = vmatpush1.bf16.msra.mxu0 0
    %199 = vmatprep.subr.bf16.mxu0 0
    %200 = vmatpush1.bf16.msra.mxu0 0
    %201 = vmatprep.subr.bf16.mxu0 0
    %202 = vmatpush1.bf16.msra.mxu0 0
    %203 = vmatprep.subr.bf16.mxu0 0
    %204 = vmatpush1.bf16.msra.mxu0 0
    %205 = vmatprep.subr.bf16.mxu0 0
    %206 = vmatpush1.bf16.msra.mxu0 0
    %207 = vmatprep.subr.bf16.mxu0 0
    %208 = vmatpush1.bf16.msra.mxu0 0
    %209 = vmatprep.subr.bf16.mxu0 0
    %210 = vmatpush1.bf16.msra.mxu0 0
    %211 = vmatprep.subr.bf16.mxu0 0
    %212 = vmatpush1.bf16.msra.mxu0 0
    %213 = vmatprep.subr.bf16.mxu0 0
    %214 = vmatpush1.bf16.msra.mxu0 0
    %215 = vmatprep.subr.bf16.mxu0 0
    %216 = vmatpush1.bf16.msra.mxu0 0
    %217 = vmatprep.subr.bf16.mxu0 0
    %218 = vmatpush1.bf16.msra.mxu0 0
    %219 = vmatprep.mubr.bf16.mxu0 0
    %220 = vmatmul.mubr.bf16.gmra.mrb[0].mxu0 %v140
    %v221 = vpop.f32.mrb[0].mxu0
    %v222 = vadd.f32 %v124, %v221
    %v223 = vpop.f32.mrb[0].mxu0
    %v224 = vpop.f32.mrb[0].mxu0
    %v225 = vadd.f32 %v124, %v224
    %v226 = vpop.f32.mrb[0].mxu0
    %227 = vmatprep.mubr.bf16.mxu0 0
    %228 = vmatmul.mubr.bf16.gmra.mrb[0].mxu0 %v143
    %v229 = vpop.f32.mrb[0].mxu0
    %v230 = vadd.f32 %v124, %v229
    %v231 = vpop.f32.mrb[0].mxu0
    %v232 = vpop.f32.mrb[0].mxu0
    %v233 = vadd.f32 %v124, %v232
    %v234 = vpop.f32.mrb[0].mxu0
    %235 = vmatprep.mubr.bf16.mxu0 0
    %236 = vmatmul.mubr.bf16.gmra.mrb[0].mxu0 %v146
    %v237 = vpop.f32.mrb[0].mxu0
    %v238 = vadd.f32 %v124, %v237
    %v239 = vpop.f32.mrb[0].mxu0
    %v240 = vpop.f32.mrb[0].mxu0
    %v241 = vadd.f32 %v124, %v240
    %v242 = vpop.f32.mrb[0].mxu0
    %243 = vmatprep.mubr.bf16.mxu0 0
    %244 = vmatmul.mubr.bf16.gmra.mrb[0].mxu0 %v149
    %v245 = vpop.f32.mrb[0].mxu0
    %v246 = vadd.f32 %v124, %v245
    %v247 = vpop.f32.mrb[0].mxu0
    %v248 = vpop.f32.mrb[0].mxu0
    %v249 = vadd.f32 %v124, %v248
    %v250 = vpop.f32.mrb[0].mxu0
    %251 = vmatprep.mubr.bf16.mxu0 0
    %252 = vmatmul.mubr.bf16.gmra.mrb[0].mxu0 %v152
    %v253 = vpop.f32.mrb[0].mxu0
    %v254 = vadd.f32 %v124, %v253
    %v255 = vpop.f32.mrb[0].mxu0
    %v256 = vpop.f32.mrb[0].mxu0
    %v257 = vadd.f32 %v124, %v256
    %v258 = vpop.f32.mrb[0].mxu0
    %259 = vmatprep.mubr.bf16.mxu0 0
    %260 = vmatmul.mubr.bf16.gmra.mrb[0].mxu0 %v155
    %v261 = vpop.f32.mrb[0].mxu0
    %v262 = vadd.f32 %v124, %v261
    %v263 = vpop.f32.mrb[0].mxu0
    %v264 = vpop.f32.mrb[0].mxu0
    %v265 = vadd.f32 %v124, %v264
    %v266 = vpop.f32.mrb[0].mxu0
    %267 = vmatprep.mubr.bf16.mxu0 0
    %268 = vmatmul.mubr.bf16.gmra.mrb[0].mxu0 %v158
    %v269 = vpop.f32.mrb[0].mxu0
    %v270 = vadd.f32 %v124, %v269
    %v271 = vpop.f32.mrb[0].mxu0
    %v272 = vpop.f32.mrb[0].mxu0
    %v273 = vadd.f32 %v124, %v272
    %v274 = vpop.f32.mrb[0].mxu0
    %275 = vmatprep.mubr.bf16.mxu0 0
    %276 = vmatmul.mubr.bf16.gmra.mrb[0].mxu0 %v161
    %v277 = vpop.f32.mrb[0].mxu0
    %v278 = vadd.f32 %v124, %v277
    %v279 = vpop.f32.mrb[0].mxu0
    %v280 = vpop.f32.mrb[0].mxu0
    %v281 = vadd.f32 %v124, %v280
    %v282 = vpop.f32.mrb[0].mxu0
    %283 = vmatprep.mubr.bf16.mxu0 0
    %284 = vmatmul.mubr.bf16.gmra.mrb[0].mxu0 %v164
    %v285 = vpop.f32.mrb[0].mxu0
    %v286 = vadd.f32 %v124, %v285
    %v287 = vpop.f32.mrb[0].mxu0
    %v288 = vpop.f32.mrb[0].mxu0
    %v289 = vadd.f32 %v124, %v288
    %v290 = vpop.f32.mrb[0].mxu0
    %291 = vmatprep.mubr.bf16.mxu0 0
    %292 = vmatmul.mubr.bf16.gmra.mrb[0].mxu0 %v167
    %v293 = vpop.f32.mrb[0].mxu0
    %v294 = vadd.f32 %v124, %v293
    %v295 = vpop.f32.mrb[0].mxu0
    %v296 = vpop.f32.mrb[0].mxu0
    %v297 = vadd.f32 %v124, %v296
    %v298 = vpop.f32.mrb[0].mxu0
    %299 = vmatprep.mubr.bf16.mxu0 0
    %300 = vmatmul.mubr.bf16.gmra.mrb[0].mxu0 %v170
    %v301 = vpop.f32.mrb[0].mxu0
    %v302 = vadd.f32 %v124, %v301
    %v303 = vpop.f32.mrb[0].mxu0
    %v304 = vpop.f32.mrb[0].mxu0
    %v305 = vadd.f32 %v124, %v304
    %v306 = vpop.f32.mrb[0].mxu0
    %307 = vmatprep.mubr.bf16.mxu0 0
    %308 = vmatmul.mubr.bf16.gmra.mrb[0].mxu0 %v173
    %v309 = vpop.f32.mrb[0].mxu0
    %v310 = vadd.f32 %v124, %v309
    %v311 = vpop.f32.mrb[0].mxu0
    %v312 = vpop.f32.mrb[0].mxu0
    %v313 = vadd.f32 %v124, %v312
    %v314 = vpop.f32.mrb[0].mxu0
    %315 = vmatprep.mubr.bf16.mxu0 0
    %316 = vmatmul.mubr.bf16.gmra.mrb[0].mxu0 %v176
    %v317 = vpop.f32.mrb[0].mxu0
    %v318 = vadd.f32 %v124, %v317
    %v319 = vpop.f32.mrb[0].mxu0
    %v320 = vpop.f32.mrb[0].mxu0
    %v321 = vadd.f32 %v124, %v320
    %v322 = vpop.f32.mrb[0].mxu0
    %323 = vmatprep.mubr.bf16.mxu0 0
    %324 = vmatmul.mubr.bf16.gmra.mrb[0].mxu0 %v179
    %v325 = vpop.f32.mrb[0].mxu0
    %v326 = vadd.f32 %v124, %v325
    %v327 = vpop.f32.mrb[0].mxu0
    %v328 = vpop.f32.mrb[0].mxu0
    %v329 = vadd.f32 %v124, %v328
    %v330 = vpop.f32.mrb[0].mxu0
    %331 = vmatprep.mubr.bf16.mxu0 0
    %332 = vmatmul.mubr.bf16.gmra.mrb[0].mxu0 %v182
    %v333 = vpop.f32.mrb[0].mxu0
    %v334 = vadd.f32 %v124, %v333
    %v335 = vpop.f32.mrb[0].mxu0
    %v336 = vpop.f32.mrb[0].mxu0
    %v337 = vadd.f32 %v124, %v336
    %v338 = vpop.f32.mrb[0].mxu0
    %339 = vmatprep.mubr.bf16.mxu0 0
    %340 = vmatmul.mubr.bf16.gmra.mrb[0].mxu0 %v185
    %v341 = vpop.f32.mrb[0].mxu0
    %v342 = vadd.f32 %v124, %v341
    %v343 = vpop.f32.mrb[0].mxu0
    %v344 = vpop.f32.mrb[0].mxu0
    %v345 = vadd.f32 %v124, %v344
    %v346 = vpop.f32.mrb[0].mxu0
    %347 = vdwg.mxu0
    %v348 = vmax.f32 %v222, 0.0
    %v349 = vmax.f32 %v225, 0.0
    %v350 = vmax.f32 %v230, 0.0
    %v351 = vmax.f32 %v233, 0.0
    %v352 = vmax.f32 %v238, 0.0
    %v353 = vmax.f32 %v241, 0.0
    %v354 = vmax.f32 %v246, 0.0
    %v355 = vmax.f32 %v249, 0.0
    %v356 = vmax.f32 %v254, 0.0
    %v357 = vmax.f32 %v257, 0.0
    %v358 = vmax.f32 %v262, 0.0
    %v359 = vmax.f32 %v265, 0.0
    %v360 = vmax.f32 %v270, 0.0
    %v361 = vmax.f32 %v273, 0.0
    %v362 = vmax.f32 %v278, 0.0
    %v363 = vmax.f32 %v281, 0.0
    %v364 = vmax.f32 %v286, 0.0
    %v365 = vmax.f32 %v289, 0.0
    %v366 = vmax.f32 %v294, 0.0
    %v367 = vmax.f32 %v297, 0.0
    %v368 = vmax.f32 %v302, 0.0
    %v369 = vmax.f32 %v305, 0.0
    %v370 = vmax.f32 %v310, 0.0
    %v371 = vmax.f32 %v313, 0.0
    %v372 = vmax.f32 %v318, 0.0
    %v373 = vmax.f32 %v321, 0.0
    %v374 = vmax.f32 %v326, 0.0
    %v375 = vmax.f32 %v329, 0.0
    %v376 = vmax.f32 %v334, 0.0
    %v377 = vmax.f32 %v337, 0.0
    %v378 = vmax.f32 %v342, 0.0
    %v379 = vmax.f32 %v345, 0.0
    %v380 = vpack.c.bf16 %v349, %v348
    %v381 = vpack.c.bf16 %v351, %v350
    %v382 = vpack.c.bf16 %v353, %v352
    %v383 = vpack.c.bf16 %v355, %v354
    %v384 = vpack.c.bf16 %v357, %v356
    %v385 = vpack.c.bf16 %v359, %v358
    %v386 = vpack.c.bf16 %v361, %v360
    %v387 = vpack.c.bf16 %v363, %v362
    %v388 = vpack.c.bf16 %v365, %v364
    %v389 = vpack.c.bf16 %v367, %v366
    %v390 = vpack.c.bf16 %v369, %v368
    %v391 = vpack.c.bf16 %v371, %v370
    %v392 = vpack.c.bf16 %v373, %v372
    %v393 = vpack.c.bf16 %v375, %v374
    %v394 = vpack.c.bf16 %v377, %v376
    %v395 = vpack.c.bf16 %v379, %v378
    %v396 = vld [vmem:[%s3] sm:$0xf]
    %v397 = vld [vmem:[%s3 + $0x4] sm:$0xf]
    %v398 = vld [vmem:[%s3 + $0x8] sm:$0xf]
    %v399 = vld [vmem:[%s3 + $0xc] sm:$0xf]
    %v400 = vld [vmem:[%s3 + $0x10] sm:$0xf]
    %v401 = vld [vmem:[%s3 + $0x14] sm:$0xf]
    %v402 = vld [vmem:[%s3 + $0x18] sm:$0xf]
    %v403 = vld [vmem:[%s3 + $0x1c] sm:$0xf]
    %v404 = vld [vmem:[%s3 + $0x20] sm:$0xf]
    %v405 = vld [vmem:[%s3 + $0x24] sm:$0xf]
    %v406 = vld [vmem:[%s3 + $0x28] sm:$0xf]
    %v407 = vld [vmem:[%s3 + $0x2c] sm:$0xf]
    %v408 = vld [vmem:[%s3 + $0x30] sm:$0xf]
    %v409 = vld [vmem:[%s3 + $0x34] sm:$0xf]
    %v410 = vld [vmem:[%s3 + $0x38] sm:$0xf]
    %v411 = vld [vmem:[%s3 + $0x3c] sm:$0xf]
    %v412 = vld [vmem:[%s4] sm:$0x1]
    %v414 = vlaneseq
    %v415 = vshrl.u32 %v414, 7
    %v416 = vsub.s32 0, %v415
    %v417 = vrot.slane %v412, %v416
    %v435 = vunpack.c.l.b16 %v396
    %v436 = vunpack.c.l.b16 %v397
    %v437 = vunpack.c.l.b16 %v398
    %v438 = vunpack.c.l.b16 %v399
    %v439 = vunpack.c.l.b16 %v400
    %v440 = vunpack.c.l.b16 %v401
    %v441 = vunpack.c.l.b16 %v402
    %v442 = vunpack.c.l.b16 %v403
    %v443 = vunpack.c.l.b16 %v404
    %v444 = vunpack.c.l.b16 %v405
    %v445 = vunpack.c.l.b16 %v406
    %v446 = vunpack.c.l.b16 %v407
    %v447 = vunpack.c.l.b16 %v408
    %v448 = vunpack.c.l.b16 %v409
    %v449 = vunpack.c.l.b16 %v410
    %v450 = vunpack.c.l.b16 %v411
    %v451 = vpack.c.b16 %v436, %v435
    %v452 = vpack.c.b16 %v438, %v437
    %v453 = vpack.c.b16 %v440, %v439
    %v454 = vpack.c.b16 %v442, %v441
    %v455 = vpack.c.b16 %v444, %v443
    %v456 = vpack.c.b16 %v446, %v445
    %v457 = vpack.c.b16 %v448, %v447
    %v458 = vpack.c.b16 %v450, %v449
    %467 = vmatprep.subr.bf16.mxu0 0
    %468 = vmatpush1.bf16.msra.mxu0 %v451
    %469 = vmatprep.subr.bf16.mxu0 0
    %470 = vmatpush1.bf16.msra.mxu0 %v452
    %471 = vmatprep.subr.bf16.mxu0 0
    %472 = vmatpush1.bf16.msra.mxu0 %v453
    %473 = vmatprep.subr.bf16.mxu0 0
    %474 = vmatpush1.bf16.msra.mxu0 %v454
    %475 = vmatprep.subr.bf16.mxu0 0
    %476 = vmatpush1.bf16.msra.mxu0 %v455
    %477 = vmatprep.subr.bf16.mxu0 0
    %478 = vmatpush1.bf16.msra.mxu0 %v456
    %479 = vmatprep.subr.bf16.mxu0 0
    %480 = vmatpush1.bf16.msra.mxu0 %v457
    %481 = vmatprep.subr.bf16.mxu0 0
    %482 = vmatpush1.bf16.msra.mxu0 %v458
    %483 = vmatprep.subr.bf16.mxu0 0
    %484 = vmatpush1.bf16.msra.mxu0 0
    %485 = vmatprep.subr.bf16.mxu0 0
    %486 = vmatpush1.bf16.msra.mxu0 0
    %487 = vmatprep.subr.bf16.mxu0 0
    %488 = vmatpush1.bf16.msra.mxu0 0
    %489 = vmatprep.subr.bf16.mxu0 0
    %490 = vmatpush1.bf16.msra.mxu0 0
    %491 = vmatprep.subr.bf16.mxu0 0
    %492 = vmatpush1.bf16.msra.mxu0 0
    %493 = vmatprep.subr.bf16.mxu0 0
    %494 = vmatpush1.bf16.msra.mxu0 0
    %495 = vmatprep.subr.bf16.mxu0 0
    %496 = vmatpush1.bf16.msra.mxu0 0
    %497 = vmatprep.subr.bf16.mxu0 0
    %498 = vmatpush1.bf16.msra.mxu0 0
    %499 = vmatprep.mubr.bf16.mxu0 0
    %500 = vmatmul.mubr.bf16.gmra.mrb[0].mxu0 %v380
    %v501 = vpop.f32.mrb[0].mxu0
    %v502 = vadd.f32 %v417, %v501
    %v503 = vpop.f32.mrb[0].mxu0
    %v504 = vpop.f32.mrb[0].mxu0
    %v505 = vadd.f32 %v417, %v504
    %v506 = vpop.f32.mrb[0].mxu0
    %507 = vmatprep.mubr.bf16.mxu0 0
    %508 = vmatmul.mubr.bf16.gmra.mrb[0].mxu0 %v381
    %v509 = vpop.f32.mrb[0].mxu0
    %v510 = vadd.f32 %v417, %v509
    %v511 = vpop.f32.mrb[0].mxu0
    %v512 = vpop.f32.mrb[0].mxu0
    %v513 = vadd.f32 %v417, %v512
    %v514 = vpop.f32.mrb[0].mxu0
    %515 = vmatprep.mubr.bf16.mxu0 0
    %516 = vmatmul.mubr.bf16.gmra.mrb[0].mxu0 %v382
    %v517 = vpop.f32.mrb[0].mxu0
    %v518 = vadd.f32 %v417, %v517
    %v519 = vpop.f32.mrb[0].mxu0
    %v520 = vpop.f32.mrb[0].mxu0
    %v521 = vadd.f32 %v417, %v520
    %v522 = vpop.f32.mrb[0].mxu0
    %523 = vmatprep.mubr.bf16.mxu0 0
    %524 = vmatmul.mubr.bf16.gmra.mrb[0].mxu0 %v383
    %v525 = vpop.f32.mrb[0].mxu0
    %v526 = vadd.f32 %v417, %v525
    %v527 = vpop.f32.mrb[0].mxu0
    %v528 = vpop.f32.mrb[0].mxu0
    %v529 = vadd.f32 %v417, %v528
    %v530 = vpop.f32.mrb[0].mxu0
    %531 = vmatprep.mubr.bf16.mxu0 0
    %532 = vmatmul.mubr.bf16.gmra.mrb[0].mxu0 %v384
    %v533 = vpop.f32.mrb[0].mxu0
    %v534 = vadd.f32 %v417, %v533
    %v535 = vpop.f32.mrb[0].mxu0
    %v536 = vpop.f32.mrb[0].mxu0
    %v537 = vadd.f32 %v417, %v536
    %v538 = vpop.f32.mrb[0].mxu0
    %539 = vmatprep.mubr.bf16.mxu0 0
    %540 = vmatmul.mubr.bf16.gmra.mrb[0].mxu0 %v385
    %v541 = vpop.f32.mrb[0].mxu0
    %v542 = vadd.f32 %v417, %v541
    %v543 = vpop.f32.mrb[0].mxu0
    %v544 = vpop.f32.mrb[0].mxu0
    %v545 = vadd.f32 %v417, %v544
    %v546 = vpop.f32.mrb[0].mxu0
    %547 = vmatprep.mubr.bf16.mxu0 0
    %548 = vmatmul.mubr.bf16.gmra.mrb[0].mxu0 %v386
    %v549 = vpop.f32.mrb[0].mxu0
    %v550 = vadd.f32 %v417, %v549
    %v551 = vpop.f32.mrb[0].mxu0
    %v552 = vpop.f32.mrb[0].mxu0
    %v553 = vadd.f32 %v417, %v552
    %v554 = vpop.f32.mrb[0].mxu0
    %555 = vmatprep.mubr.bf16.mxu0 0
    %556 = vmatmul.mubr.bf16.gmra.mrb[0].mxu0 %v387
    %v557 = vpop.f32.mrb[0].mxu0
    %v558 = vadd.f32 %v417, %v557
    %v559 = vpop.f32.mrb[0].mxu0
    %v560 = vpop.f32.mrb[0].mxu0
    %v561 = vadd.f32 %v417, %v560
    %v562 = vpop.f32.mrb[0].mxu0
    %563 = vmatprep.mubr.bf16.mxu0 0
    %564 = vmatmul.mubr.bf16.gmra.mrb[0].mxu0 %v388
    %v565 = vpop.f32.mrb[0].mxu0
    %v566 = vadd.f32 %v417, %v565
    %v567 = vpop.f32.mrb[0].mxu0
    %v568 = vpop.f32.mrb[0].mxu0
    %v569 = vadd.f32 %v417, %v568
    %v570 = vpop.f32.mrb[0].mxu0
    %571 = vmatprep.mubr.bf16.mxu0 0
    %572 = vmatmul.mubr.bf16.gmra.mrb[0].mxu0 %v389
    %v573 = vpop.f32.mrb[0].mxu0
    %v574 = vadd.f32 %v417, %v573
    %v575 = vpop.f32.mrb[0].mxu0
    %v576 = vpop.f32.mrb[0].mxu0
    %v577 = vadd.f32 %v417, %v576
    %v578 = vpop.f32.mrb[0].mxu0
    %579 = vmatprep.mubr.bf16.mxu0 0
    %580 = vmatmul.mubr.bf16.gmra.mrb[0].mxu0 %v390
    %v581 = vpop.f32.mrb[0].mxu0
    %v582 = vadd.f32 %v417, %v581
    %v583 = vpop.f32.mrb[0].mxu0
    %v584 = vpop.f32.mrb[0].mxu0
    %v585 = vadd.f32 %v417, %v584
    %v586 = vpop.f32.mrb[0].mxu0
    %587 = vmatprep.mubr.bf16.mxu0 0
    %588 = vmatmul.mubr.bf16.gmra.mrb[0].mxu0 %v391
    %v589 = vpop.f32.mrb[0].mxu0
    %v590 = vadd.f32 %v417, %v589
    %v591 = vpop.f32.mrb[0].mxu0
    %v592 = vpop.f32.mrb[0].mxu0
    %v593 = vadd.f32 %v417, %v592
    %v594 = vpop.f32.mrb[0].mxu0
    %595 = vmatprep.mubr.bf16.mxu0 0
    %596 = vmatmul.mubr.bf16.gmra.mrb[0].mxu0 %v392
    %v597 = vpop.f32.mrb[0].mxu0
    %v598 = vadd.f32 %v417, %v597
    %v599 = vpop.f32.mrb[0].mxu0
    %v600 = vpop.f32.mrb[0].mxu0
    %v601 = vadd.f32 %v417, %v600
    %v602 = vpop.f32.mrb[0].mxu0
    %603 = vmatprep.mubr.bf16.mxu0 0
    %604 = vmatmul.mubr.bf16.gmra.mrb[0].mxu0 %v393
    %v605 = vpop.f32.mrb[0].mxu0
    %v606 = vadd.f32 %v417, %v605
    %v607 = vpop.f32.mrb[0].mxu0
    %v608 = vpop.f32.mrb[0].mxu0
    %v609 = vadd.f32 %v417, %v608
    %v610 = vpop.f32.mrb[0].mxu0
    %611 = vmatprep.mubr.bf16.mxu0 0
    %612 = vmatmul.mubr.bf16.gmra.mrb[0].mxu0 %v394
    %v613 = vpop.f32.mrb[0].mxu0
    %v614 = vadd.f32 %v417, %v613
    %v615 = vpop.f32.mrb[0].mxu0
    %v616 = vpop.f32.mrb[0].mxu0
    %v617 = vadd.f32 %v417, %v616
    %v618 = vpop.f32.mrb[0].mxu0
    %619 = vmatprep.mubr.bf16.mxu0 0
    %620 = vmatmul.mubr.bf16.gmra.mrb[0].mxu0 %v395
    %v621 = vpop.f32.mrb[0].mxu0
    %v622 = vadd.f32 %v417, %v621
    %v623 = vpop.f32.mrb[0].mxu0
    %v624 = vpop.f32.mrb[0].mxu0
    %v625 = vadd.f32 %v417, %v624
    %v626 = vpop.f32.mrb[0].mxu0
    %627 = vdwg.mxu0
    %v628 = vmax.f32 %v502, 0.0
    %v629 = vmax.f32 %v505, 0.0
    %v630 = vmax.f32 %v510, 0.0
    %v631 = vmax.f32 %v513, 0.0
    %v632 = vmax.f32 %v518, 0.0
    %v633 = vmax.f32 %v521, 0.0
    %v634 = vmax.f32 %v526, 0.0
    %v635 = vmax.f32 %v529, 0.0
    %v636 = vmax.f32 %v534, 0.0
    %v637 = vmax.f32 %v537, 0.0
    %v638 = vmax.f32 %v542, 0.0
    %v639 = vmax.f32 %v545, 0.0
    %v640 = vmax.f32 %v550, 0.0
    %v641 = vmax.f32 %v553, 0.0
    %v642 = vmax.f32 %v558, 0.0
    %v643 = vmax.f32 %v561, 0.0
    %v644 = vmax.f32 %v566, 0.0
    %v645 = vmax.f32 %v569, 0.0
    %v646 = vmax.f32 %v574, 0.0
    %v647 = vmax.f32 %v577, 0.0
    %v648 = vmax.f32 %v582, 0.0
    %v649 = vmax.f32 %v585, 0.0
    %v650 = vmax.f32 %v590, 0.0
    %v651 = vmax.f32 %v593, 0.0
    %v652 = vmax.f32 %v598, 0.0
    %v653 = vmax.f32 %v601, 0.0
    %v654 = vmax.f32 %v606, 0.0
    %v655 = vmax.f32 %v609, 0.0
    %v656 = vmax.f32 %v614, 0.0
    %v657 = vmax.f32 %v617, 0.0
    %v658 = vmax.f32 %v622, 0.0
    %v659 = vmax.f32 %v625, 0.0
    %v660 = vpack.c.bf16 %v629, %v628
    %v661 = vpack.c.bf16 %v631, %v630
    %v662 = vpack.c.bf16 %v633, %v632
    %v663 = vpack.c.bf16 %v635, %v634
    %v664 = vpack.c.bf16 %v637, %v636
    %v665 = vpack.c.bf16 %v639, %v638
    %v666 = vpack.c.bf16 %v641, %v640
    %v667 = vpack.c.bf16 %v643, %v642
    %v668 = vpack.c.bf16 %v645, %v644
    %v669 = vpack.c.bf16 %v647, %v646
    %v670 = vpack.c.bf16 %v649, %v648
    %v671 = vpack.c.bf16 %v651, %v650
    %v672 = vpack.c.bf16 %v653, %v652
    %v673 = vpack.c.bf16 %v655, %v654
    %v674 = vpack.c.bf16 %v657, %v656
    %v675 = vpack.c.bf16 %v659, %v658
    %v676 = vld [vmem:[#allocation2] sm:$0xff]
    %v677 = vld [vmem:[#allocation2 + $0x8] sm:$0xff]
    %v678 = vld [vmem:[#allocation2 + $0x10] sm:$0xff]
    %v679 = vld [vmem:[#allocation2 + $0x18] sm:$0xff]
    %v680 = vld [vmem:[#allocation2 + $0x20] sm:$0xff]
    %v681 = vld [vmem:[#allocation2 + $0x28] sm:$0xff]
    %v682 = vld [vmem:[#allocation2 + $0x30] sm:$0xff]
    %v683 = vld [vmem:[#allocation2 + $0x38] sm:$0xff]
    %v684 = vld [vmem:[#allocation2 + $0x40] sm:$0xff]
    %v685 = vld [vmem:[#allocation2 + $0x48] sm:$0xff]
    %v686 = vld [vmem:[#allocation2 + $0x50] sm:$0xff]
    %v687 = vld [vmem:[#allocation2 + $0x58] sm:$0xff]
    %v688 = vld [vmem:[#allocation2 + $0x60] sm:$0xff]
    %v689 = vld [vmem:[#allocation2 + $0x68] sm:$0xff]
    %v690 = vld [vmem:[#allocation2 + $0x70] sm:$0xff]
    %v691 = vld [vmem:[#allocation2 + $0x78] sm:$0xff]
    %v692 = vld [vmem:[%s6] sm:$0x3]
    %v694 = vlaneseq
    %v695 = vshrl.u32 %v694, 7
    %v696 = vsub.s32 0, %v695
    %v697 = vrot.slane %v692, %v696
    %v698 = vlaneseq
    %v699 = vshrl.u32 %v698, 7
    %v700 = vsub.s32 1, %v699
    %v701 = vrot.slane %v692, %v700
    %v720 = vunpack.c.l.b16 %v676
    %v721 = vunpack.c.h.b16 %v676
    %v722 = vunpack.c.l.b16 %v677
    %v723 = vunpack.c.h.b16 %v677
    %v724 = vunpack.c.l.b16 %v678
    %v725 = vunpack.c.h.b16 %v678
    %v726 = vunpack.c.l.b16 %v679
    %v727 = vunpack.c.h.b16 %v679
    %v728 = vunpack.c.l.b16 %v680
    %v729 = vunpack.c.h.b16 %v680
    %v730 = vunpack.c.l.b16 %v681
    %v731 = vunpack.c.h.b16 %v681
    %v732 = vunpack.c.l.b16 %v682
    %v733 = vunpack.c.h.b16 %v682
    %v734 = vunpack.c.l.b16 %v683
    %v735 = vunpack.c.h.b16 %v683
    %v736 = vunpack.c.l.b16 %v684
    %v737 = vunpack.c.h.b16 %v684
    %v738 = vunpack.c.l.b16 %v685
    %v739 = vunpack.c.h.b16 %v685
    %v740 = vunpack.c.l.b16 %v686
    %v741 = vunpack.c.h.b16 %v686
    %v742 = vunpack.c.l.b16 %v687
    %v743 = vunpack.c.h.b16 %v687
    %v744 = vunpack.c.l.b16 %v688
    %v745 = vunpack.c.h.b16 %v688
    %v746 = vunpack.c.l.b16 %v689
    %v747 = vunpack.c.h.b16 %v689
    %v748 = vunpack.c.l.b16 %v690
    %v749 = vunpack.c.h.b16 %v690
    %v750 = vunpack.c.l.b16 %v691
    %v751 = vunpack.c.h.b16 %v691
    %v752 = vpack.c.b16 %v722, %v720
    %v753 = vpack.c.b16 %v723, %v721
    %v754 = vpack.c.b16 %v726, %v724
    %v755 = vpack.c.b16 %v727, %v725
    %v756 = vpack.c.b16 %v730, %v728
    %v757 = vpack.c.b16 %v731, %v729
    %v758 = vpack.c.b16 %v734, %v732
    %v759 = vpack.c.b16 %v735, %v733
    %v760 = vpack.c.b16 %v738, %v736
    %v761 = vpack.c.b16 %v739, %v737
    %v762 = vpack.c.b16 %v742, %v740
    %v763 = vpack.c.b16 %v743, %v741
    %v764 = vpack.c.b16 %v746, %v744
    %v765 = vpack.c.b16 %v747, %v745
    %v766 = vpack.c.b16 %v750, %v748
    %v767 = vpack.c.b16 %v751, %v749
    %784 = vmatprep.subr.bf16.mxu0 %v753
    %785 = vmatpush1.bf16.msra.mxu0 %v752
    %786 = vmatprep.subr.bf16.mxu0 %v755
    %787 = vmatpush1.bf16.msra.mxu0 %v754
    %788 = vmatprep.subr.bf16.mxu0 %v757
    %789 = vmatpush1.bf16.msra.mxu0 %v756
    %790 = vmatprep.subr.bf16.mxu0 %v759
    %791 = vmatpush1.bf16.msra.mxu0 %v758
    %792 = vmatprep.subr.bf16.mxu0 %v761
    %793 = vmatpush1.bf16.msra.mxu0 %v760
    %794 = vmatprep.subr.bf16.mxu0 %v763
    %795 = vmatpush1.bf16.msra.mxu0 %v762
    %796 = vmatprep.subr.bf16.mxu0 %v765
    %797 = vmatpush1.bf16.msra.mxu0 %v764
    %798 = vmatprep.subr.bf16.mxu0 %v767
    %799 = vmatpush1.bf16.msra.mxu0 %v766
    %800 = vmatprep.subr.bf16.mxu0 0
    %801 = vmatpush1.bf16.msra.mxu0 0
    %802 = vmatprep.subr.bf16.mxu0 0
    %803 = vmatpush1.bf16.msra.mxu0 0
    %804 = vmatprep.subr.bf16.mxu0 0
    %805 = vmatpush1.bf16.msra.mxu0 0
    %806 = vmatprep.subr.bf16.mxu0 0
    %807 = vmatpush1.bf16.msra.mxu0 0
    %808 = vmatprep.subr.bf16.mxu0 0
    %809 = vmatpush1.bf16.msra.mxu0 0
    %810 = vmatprep.subr.bf16.mxu0 0
    %811 = vmatpush1.bf16.msra.mxu0 0
    %812 = vmatprep.subr.bf16.mxu0 0
    %813 = vmatpush1.bf16.msra.mxu0 0
    %814 = vmatprep.subr.bf16.mxu0 0
    %815 = vmatpush1.bf16.msra.mxu0 0
    %816 = vmatprep.mubr.bf16.mxu0 0
    %817 = vmatmul.mubr.bf16.gmra.mrb[0].mxu0 %v660
    %v818 = vpop.f32.mrb[0].mxu0
    %v819 = vadd.f32 %v697, %v818
    %v820 = vpop.f32.mrb[0].mxu0
    %v821 = vadd.f32 %v701, %v820
    %v822 = vpop.f32.mrb[0].mxu0
    %v823 = vadd.f32 %v697, %v822
    %v824 = vpop.f32.mrb[0].mxu0
    %v825 = vadd.f32 %v701, %v824
    %826 = vmatprep.mubr.bf16.mxu0 0
    %827 = vmatmul.mubr.bf16.gmra.mrb[0].mxu0 %v661
    %v828 = vpop.f32.mrb[0].mxu0
    %v829 = vadd.f32 %v697, %v828
    %v830 = vpop.f32.mrb[0].mxu0
    %v831 = vadd.f32 %v701, %v830
    %v832 = vpop.f32.mrb[0].mxu0
    %v833 = vadd.f32 %v697, %v832
    %v834 = vpop.f32.mrb[0].mxu0
    %v835 = vadd.f32 %v701, %v834
    %836 = vmatprep.mubr.bf16.mxu0 0
    %837 = vmatmul.mubr.bf16.gmra.mrb[0].mxu0 %v662
    %v838 = vpop.f32.mrb[0].mxu0
    %v839 = vadd.f32 %v697, %v838
    %v840 = vpop.f32.mrb[0].mxu0
    %v841 = vadd.f32 %v701, %v840
    %v842 = vpop.f32.mrb[0].mxu0
    %v843 = vadd.f32 %v697, %v842
    %v844 = vpop.f32.mrb[0].mxu0
    %v845 = vadd.f32 %v701, %v844
    %846 = vmatprep.mubr.bf16.mxu0 0
    %847 = vmatmul.mubr.bf16.gmra.mrb[0].mxu0 %v663
    %v848 = vpop.f32.mrb[0].mxu0
    %v849 = vadd.f32 %v697, %v848
    %v850 = vpop.f32.mrb[0].mxu0
    %v851 = vadd.f32 %v701, %v850
    %v852 = vpop.f32.mrb[0].mxu0
    %v853 = vadd.f32 %v697, %v852
    %v854 = vpop.f32.mrb[0].mxu0
    %v855 = vadd.f32 %v701, %v854
    %856 = vmatprep.mubr.bf16.mxu0 0
    %857 = vmatmul.mubr.bf16.gmra.mrb[0].mxu0 %v664
    %v858 = vpop.f32.mrb[0].mxu0
    %v859 = vadd.f32 %v697, %v858
    %v860 = vpop.f32.mrb[0].mxu0
    %v861 = vadd.f32 %v701, %v860
    %v862 = vpop.f32.mrb[0].mxu0
    %v863 = vadd.f32 %v697, %v862
    %v864 = vpop.f32.mrb[0].mxu0
    %v865 = vadd.f32 %v701, %v864
    %866 = vmatprep.mubr.bf16.mxu0 0
    %867 = vmatmul.mubr.bf16.gmra.mrb[0].mxu0 %v665
    %v868 = vpop.f32.mrb[0].mxu0
    %v869 = vadd.f32 %v697, %v868
    %v870 = vpop.f32.mrb[0].mxu0
    %v871 = vadd.f32 %v701, %v870
    %v872 = vpop.f32.mrb[0].mxu0
    %v873 = vadd.f32 %v697, %v872
    %v874 = vpop.f32.mrb[0].mxu0
    %v875 = vadd.f32 %v701, %v874
    %876 = vmatprep.mubr.bf16.mxu0 0
    %877 = vmatmul.mubr.bf16.gmra.mrb[0].mxu0 %v666
    %v878 = vpop.f32.mrb[0].mxu0
    %v879 = vadd.f32 %v697, %v878
    %v880 = vpop.f32.mrb[0].mxu0
    %v881 = vadd.f32 %v701, %v880
    %v882 = vpop.f32.mrb[0].mxu0
    %v883 = vadd.f32 %v697, %v882
    %v884 = vpop.f32.mrb[0].mxu0
    %v885 = vadd.f32 %v701, %v884
    %886 = vmatprep.mubr.bf16.mxu0 0
    %887 = vmatmul.mubr.bf16.gmra.mrb[0].mxu0 %v667
    %v888 = vpop.f32.mrb[0].mxu0
    %v889 = vadd.f32 %v697, %v888
    %v890 = vpop.f32.mrb[0].mxu0
    %v891 = vadd.f32 %v701, %v890
    %v892 = vpop.f32.mrb[0].mxu0
    %v893 = vadd.f32 %v697, %v892
    %v894 = vpop.f32.mrb[0].mxu0
    %v895 = vadd.f32 %v701, %v894
    %896 = vmatprep.mubr.bf16.mxu0 0
    %897 = vmatmul.mubr.bf16.gmra.mrb[0].mxu0 %v668
    %v898 = vpop.f32.mrb[0].mxu0
    %v899 = vadd.f32 %v697, %v898
    %v900 = vpop.f32.mrb[0].mxu0
    %v901 = vadd.f32 %v701, %v900
    %v902 = vpop.f32.mrb[0].mxu0
    %v903 = vadd.f32 %v697, %v902
    %v904 = vpop.f32.mrb[0].mxu0
    %v905 = vadd.f32 %v701, %v904
    %906 = vmatprep.mubr.bf16.mxu0 0
    %907 = vmatmul.mubr.bf16.gmra.mrb[0].mxu0 %v669
    %v908 = vpop.f32.mrb[0].mxu0
    %v909 = vadd.f32 %v697, %v908
    %v910 = vpop.f32.mrb[0].mxu0
    %v911 = vadd.f32 %v701, %v910
    %v912 = vpop.f32.mrb[0].mxu0
    %v913 = vadd.f32 %v697, %v912
    %v914 = vpop.f32.mrb[0].mxu0
    %v915 = vadd.f32 %v701, %v914
    %916 = vmatprep.mubr.bf16.mxu0 0
    %917 = vmatmul.mubr.bf16.gmra.mrb[0].mxu0 %v670
    %v918 = vpop.f32.mrb[0].mxu0
    %v919 = vadd.f32 %v697, %v918
    %v920 = vpop.f32.mrb[0].mxu0
    %v921 = vadd.f32 %v701, %v920
    %v922 = vpop.f32.mrb[0].mxu0
    %v923 = vadd.f32 %v697, %v922
    %v924 = vpop.f32.mrb[0].mxu0
    %v925 = vadd.f32 %v701, %v924
    %926 = vmatprep.mubr.bf16.mxu0 0
    %927 = vmatmul.mubr.bf16.gmra.mrb[0].mxu0 %v671
    %v928 = vpop.f32.mrb[0].mxu0
    %v929 = vadd.f32 %v697, %v928
    %v930 = vpop.f32.mrb[0].mxu0
    %v931 = vadd.f32 %v701, %v930
    %v932 = vpop.f32.mrb[0].mxu0
    %v933 = vadd.f32 %v697, %v932
    %v934 = vpop.f32.mrb[0].mxu0
    %v935 = vadd.f32 %v701, %v934
    %936 = vmatprep.mubr.bf16.mxu0 0
    %937 = vmatmul.mubr.bf16.gmra.mrb[0].mxu0 %v672
    %v938 = vpop.f32.mrb[0].mxu0
    %v939 = vadd.f32 %v697, %v938
    %v940 = vpop.f32.mrb[0].mxu0
    %v941 = vadd.f32 %v701, %v940
    %v942 = vpop.f32.mrb[0].mxu0
    %v943 = vadd.f32 %v697, %v942
    %v944 = vpop.f32.mrb[0].mxu0
    %v945 = vadd.f32 %v701, %v944
    %946 = vmatprep.mubr.bf16.mxu0 0
    %947 = vmatmul.mubr.bf16.gmra.mrb[0].mxu0 %v673
    %v948 = vpop.f32.mrb[0].mxu0
    %v949 = vadd.f32 %v697, %v948
    %v950 = vpop.f32.mrb[0].mxu0
    %v951 = vadd.f32 %v701, %v950
    %v952 = vpop.f32.mrb[0].mxu0
    %v953 = vadd.f32 %v697, %v952
    %v954 = vpop.f32.mrb[0].mxu0
    %v955 = vadd.f32 %v701, %v954
    %956 = vmatprep.mubr.bf16.mxu0 0
    %957 = vmatmul.mubr.bf16.gmra.mrb[0].mxu0 %v674
    %v958 = vpop.f32.mrb[0].mxu0
    %v959 = vadd.f32 %v697, %v958
    %v960 = vpop.f32.mrb[0].mxu0
    %v961 = vadd.f32 %v701, %v960
    %v962 = vpop.f32.mrb[0].mxu0
    %v963 = vadd.f32 %v697, %v962
    %v964 = vpop.f32.mrb[0].mxu0
    %v965 = vadd.f32 %v701, %v964
    %966 = vmatprep.mubr.bf16.mxu0 0
    %967 = vmatmul.mubr.bf16.gmra.mrb[0].mxu0 %v675
    %v968 = vpop.f32.mrb[0].mxu0
    %v969 = vadd.f32 %v697, %v968
    %v970 = vpop.f32.mrb[0].mxu0
    %v971 = vadd.f32 %v701, %v970
    %v972 = vpop.f32.mrb[0].mxu0
    %v973 = vadd.f32 %v697, %v972
    %v974 = vpop.f32.mrb[0].mxu0
    %v975 = vadd.f32 %v701, %v974
    %976 = vdwg.mxu0
    %v977 = vmax.f32 %v819, 0.0
    %v978 = vmax.f32 %v821, 0.0
    %v979 = vmax.f32 %v823, 0.0
    %v980 = vmax.f32 %v825, 0.0
    %v981 = vmax.f32 %v829, 0.0
    %v982 = vmax.f32 %v831, 0.0
    %v983 = vmax.f32 %v833, 0.0
    %v984 = vmax.f32 %v835, 0.0
    %v985 = vmax.f32 %v839, 0.0
    %v986 = vmax.f32 %v841, 0.0
    %v987 = vmax.f32 %v843, 0.0
    %v988 = vmax.f32 %v845, 0.0
    %v989 = vmax.f32 %v849, 0.0
    %v990 = vmax.f32 %v851, 0.0
    %v991 = vmax.f32 %v853, 0.0
    %v992 = vmax.f32 %v855, 0.0
    %v993 = vmax.f32 %v859, 0.0
    %v994 = vmax.f32 %v861, 0.0
    %v995 = vmax.f32 %v863, 0.0
    %v996 = vmax.f32 %v865, 0.0
    %v997 = vmax.f32 %v869, 0.0
    %v998 = vmax.f32 %v871, 0.0
    %v999 = vmax.f32 %v873, 0.0
    %v1000 = vmax.f32 %v875, 0.0
    %v1001 = vmax.f32 %v879, 0.0
    %v1002 = vmax.f32 %v881, 0.0
    %v1003 = vmax.f32 %v883, 0.0
    %v1004 = vmax.f32 %v885, 0.0
    %v1005 = vmax.f32 %v889, 0.0
    %v1006 = vmax.f32 %v891, 0.0
    %v1007 = vmax.f32 %v893, 0.0
    %v1008 = vmax.f32 %v895, 0.0
    %v1009 = vmax.f32 %v899, 0.0
    %v1010 = vmax.f32 %v901, 0.0
    %v1011 = vmax.f32 %v903, 0.0
    %v1012 = vmax.f32 %v905, 0.0
    %v1013 = vmax.f32 %v909, 0.0
    %v1014 = vmax.f32 %v911, 0.0
    %v1015 = vmax.f32 %v913, 0.0
    %v1016 = vmax.f32 %v915, 0.0
    %v1017 = vmax.f32 %v919, 0.0
    %v1018 = vmax.f32 %v921, 0.0
    %v1019 = vmax.f32 %v923, 0.0
    %v1020 = vmax.f32 %v925, 0.0
    %v1021 = vmax.f32 %v929, 0.0
    %v1022 = vmax.f32 %v931, 0.0
    %v1023 = vmax.f32 %v933, 0.0
    %v1024 = vmax.f32 %v935, 0.0
    %v1025 = vmax.f32 %v939, 0.0
    %v1026 = vmax.f32 %v941, 0.0
    %v1027 = vmax.f32 %v943, 0.0
    %v1028 = vmax.f32 %v945, 0.0
    %v1029 = vmax.f32 %v949, 0.0
    %v1030 = vmax.f32 %v951, 0.0
    %v1031 = vmax.f32 %v953, 0.0
    %v1032 = vmax.f32 %v955, 0.0
    %v1033 = vmax.f32 %v959, 0.0
    %v1034 = vmax.f32 %v961, 0.0
    %v1035 = vmax.f32 %v963, 0.0
    %v1036 = vmax.f32 %v965, 0.0
    %v1037 = vmax.f32 %v969, 0.0
    %v1038 = vmax.f32 %v971, 0.0
    %v1039 = vmax.f32 %v973, 0.0
    %v1040 = vmax.f32 %v975, 0.0
    %v1041 = vpack.c.bf16 %v979, %v977
    %v1042 = vpack.c.bf16 %v980, %v978
    %v1043 = vpack.c.bf16 %v983, %v981
    %v1044 = vpack.c.bf16 %v984, %v982
    %v1045 = vpack.c.bf16 %v987, %v985
    %v1046 = vpack.c.bf16 %v988, %v986
    %v1047 = vpack.c.bf16 %v991, %v989
    %v1048 = vpack.c.bf16 %v992, %v990
    %v1049 = vpack.c.bf16 %v995, %v993
    %v1050 = vpack.c.bf16 %v996, %v994
    %v1051 = vpack.c.bf16 %v999, %v997
    %v1052 = vpack.c.bf16 %v1000, %v998
    %v1053 = vpack.c.bf16 %v1003, %v1001
    %v1054 = vpack.c.bf16 %v1004, %v1002
    %v1055 = vpack.c.bf16 %v1007, %v1005
    %v1056 = vpack.c.bf16 %v1008, %v1006
    %v1057 = vpack.c.bf16 %v1011, %v1009
    %v1058 = vpack.c.bf16 %v1012, %v1010
    %v1059 = vpack.c.bf16 %v1015, %v1013
    %v1060 = vpack.c.bf16 %v1016, %v1014
    %v1061 = vpack.c.bf16 %v1019, %v1017
    %v1062 = vpack.c.bf16 %v1020, %v1018
    %v1063 = vpack.c.bf16 %v1023, %v1021
    %v1064 = vpack.c.bf16 %v1024, %v1022
    %v1065 = vpack.c.bf16 %v1027, %v1025
    %v1066 = vpack.c.bf16 %v1028, %v1026
    %v1067 = vpack.c.bf16 %v1031, %v1029
    %v1068 = vpack.c.bf16 %v1032, %v1030
    %v1069 = vpack.c.bf16 %v1035, %v1033
    %v1070 = vpack.c.bf16 %v1036, %v1034
    %v1071 = vpack.c.bf16 %v1039, %v1037
    %v1072 = vpack.c.bf16 %v1040, %v1038
    %v1073 = vld [vmem:[#allocation4] sm:$0xff]
    %v1074 = vld [vmem:[#allocation4 + $0x8] sm:$0xff]
    %v1075 = vld [vmem:[#allocation4 + $0x10] sm:$0xff]
    %v1076 = vld [vmem:[#allocation4 + $0x18] sm:$0xff]
    %v1077 = vld [vmem:[#allocation4 + $0x20] sm:$0xff]
    %v1078 = vld [vmem:[#allocation4 + $0x28] sm:$0xff]
    %v1079 = vld [vmem:[#allocation4 + $0x30] sm:$0xff]
    %v1080 = vld [vmem:[#allocation4 + $0x38] sm:$0xff]
    %v1081 = vld [vmem:[#allocation4 + $0x40] sm:$0xff]
    %v1082 = vld [vmem:[#allocation4 + $0x48] sm:$0xff]
    %v1083 = vld [vmem:[#allocation4 + $0x50] sm:$0xff]
    %v1084 = vld [vmem:[#allocation4 + $0x58] sm:$0xff]
    %v1085 = vld [vmem:[#allocation4 + $0x60] sm:$0xff]
    %v1086 = vld [vmem:[#allocation4 + $0x68] sm:$0xff]
    %v1087 = vld [vmem:[#allocation4 + $0x70] sm:$0xff]
    %v1088 = vld [vmem:[#allocation4 + $0x78] sm:$0xff]
    %v1089 = vld [vmem:[#allocation4 + $0x80] sm:$0xff]
    %v1090 = vld [vmem:[#allocation4 + $0x88] sm:$0xff]
    %v1091 = vld [vmem:[#allocation4 + $0x90] sm:$0xff]
    %v1092 = vld [vmem:[#allocation4 + $0x98] sm:$0xff]
    %v1093 = vld [vmem:[#allocation4 + $0xa0] sm:$0xff]
    %v1094 = vld [vmem:[#allocation4 + $0xa8] sm:$0xff]
    %v1095 = vld [vmem:[#allocation4 + $0xb0] sm:$0xff]
    %v1096 = vld [vmem:[#allocation4 + $0xb8] sm:$0xff]
    %v1097 = vld [vmem:[#allocation4 + $0xc0] sm:$0xff]
    %v1098 = vld [vmem:[#allocation4 + $0xc8] sm:$0xff]
    %v1099 = vld [vmem:[#allocation4 + $0xd0] sm:$0xff]
    %v1100 = vld [vmem:[#allocation4 + $0xd8] sm:$0xff]
    %v1101 = vld [vmem:[#allocation4 + $0xe0] sm:$0xff]
    %v1102 = vld [vmem:[#allocation4 + $0xe8] sm:$0xff]
    %v1103 = vld [vmem:[#allocation4 + $0xf0] sm:$0xff]
    %v1104 = vld [vmem:[#allocation4 + $0xf8] sm:$0xff]
    %v1105 = vld [vmem:[#allocation4 + $0x100] sm:$0xff]
    %v1106 = vld [vmem:[#allocation4 + $0x108] sm:$0xff]
    %v1107 = vld [vmem:[#allocation4 + $0x110] sm:$0xff]
    %v1108 = vld [vmem:[#allocation4 + $0x118] sm:$0xff]
    %v1109 = vld [vmem:[#allocation4 + $0x120] sm:$0xff]
    %v1110 = vld [vmem:[#allocation4 + $0x128] sm:$0xff]
    %v1111 = vld [vmem:[#allocation4 + $0x130] sm:$0xff]
    %v1112 = vld [vmem:[#allocation4 + $0x138] sm:$0xff]
    %v1113 = vld [vmem:[#allocation4 + $0x140] sm:$0xff]
    %v1114 = vld [vmem:[#allocation4 + $0x148] sm:$0xff]
    %v1115 = vld [vmem:[#allocation4 + $0x150] sm:$0xff]
    %v1116 = vld [vmem:[#allocation4 + $0x158] sm:$0xff]
    %v1117 = vld [vmem:[#allocation4 + $0x160] sm:$0xff]
    %v1118 = vld [vmem:[#allocation4 + $0x168] sm:$0xff]
    %v1119 = vld [vmem:[#allocation4 + $0x170] sm:$0xff]
    %v1120 = vld [vmem:[#allocation4 + $0x178] sm:$0xff]
    %v1121 = vld [vmem:[#allocation4 + $0x180] sm:$0xff]
    %v1122 = vld [vmem:[#allocation4 + $0x188] sm:$0xff]
    %v1123 = vld [vmem:[#allocation4 + $0x190] sm:$0xff]
    %v1124 = vld [vmem:[#allocation4 + $0x198] sm:$0xff]
    %v1125 = vld [vmem:[#allocation4 + $0x1a0] sm:$0xff]
    %v1126 = vld [vmem:[#allocation4 + $0x1a8] sm:$0xff]
    %v1127 = vld [vmem:[#allocation4 + $0x1b0] sm:$0xff]
    %v1128 = vld [vmem:[#allocation4 + $0x1b8] sm:$0xff]
    %v1129 = vld [vmem:[#allocation4 + $0x1c0] sm:$0xff]
    %v1130 = vld [vmem:[#allocation4 + $0x1c8] sm:$0xff]
    %v1131 = vld [vmem:[#allocation4 + $0x1d0] sm:$0xff]
    %v1132 = vld [vmem:[#allocation4 + $0x1d8] sm:$0xff]
    %v1133 = vld [vmem:[#allocation4 + $0x1e0] sm:$0xff]
    %v1134 = vld [vmem:[#allocation4 + $0x1e8] sm:$0xff]
    %v1135 = vld [vmem:[#allocation4 + $0x1f0] sm:$0xff]
    %v1136 = vld [vmem:[#allocation4 + $0x1f8] sm:$0xff]
    %v1137 = vld [vmem:[%s8] sm:$0xf]
    %v1139 = vlaneseq
    %v1140 = vshrl.u32 %v1139, 7
    %v1141 = vsub.s32 0, %v1140
    %v1142 = vrot.slane %v1137, %v1141
    %v1143 = vlaneseq
    %v1144 = vshrl.u32 %v1143, 7
    %v1145 = vsub.s32 1, %v1144
    %v1146 = vrot.slane %v1137, %v1145
    %v1147 = vlaneseq
    %v1148 = vshrl.u32 %v1147, 7
    %v1149 = vsub.s32 2, %v1148
    %v1150 = vrot.slane %v1137, %v1149
    %v1151 = vlaneseq
    %v1152 = vshrl.u32 %v1151, 7
    %v1153 = vsub.s32 3, %v1152
    %v1154 = vrot.slane %v1137, %v1153
    %v1223 = vunpack.c.l.b16 %v1073
    %v1224 = vunpack.c.h.b16 %v1073
    %v1225 = vunpack.c.l.b16 %v1074
    %v1226 = vunpack.c.h.b16 %v1074
    %v1227 = vunpack.c.l.b16 %v1075
    %v1228 = vunpack.c.h.b16 %v1075
    %v1229 = vunpack.c.l.b16 %v1076
    %v1230 = vunpack.c.h.b16 %v1076
    %v1231 = vunpack.c.l.b16 %v1077
    %v1232 = vunpack.c.h.b16 %v1077
    %v1233 = vunpack.c.l.b16 %v1078
    %v1234 = vunpack.c.h.b16 %v1078
    %v1235 = vunpack.c.l.b16 %v1079
    %v1236 = vunpack.c.h.b16 %v1079
    %v1237 = vunpack.c.l.b16 %v1080
    %v1238 = vunpack.c.h.b16 %v1080
    %v1239 = vunpack.c.l.b16 %v1081
    %v1240 = vunpack.c.h.b16 %v1081
    %v1241 = vunpack.c.l.b16 %v1082
    %v1242 = vunpack.c.h.b16 %v1082
    %v1243 = vunpack.c.l.b16 %v1083
    %v1244 = vunpack.c.h.b16 %v1083
    %v1245 = vunpack.c.l.b16 %v1084
    %v1246 = vunpack.c.h.b16 %v1084
    %v1247 = vunpack.c.l.b16 %v1085
    %v1248 = vunpack.c.h.b16 %v1085
    %v1249 = vunpack.c.l.b16 %v1086
    %v1250 = vunpack.c.h.b16 %v1086
    %v1251 = vunpack.c.l.b16 %v1087
    %v1252 = vunpack.c.h.b16 %v1087
    %v1253 = vunpack.c.l.b16 %v1088
    %v1254 = vunpack.c.h.b16 %v1088
    %v1255 = vunpack.c.l.b16 %v1089
    %v1256 = vunpack.c.h.b16 %v1089
    %v1257 = vunpack.c.l.b16 %v1090
    %v1258 = vunpack.c.h.b16 %v1090
    %v1259 = vunpack.c.l.b16 %v1091
    %v1260 = vunpack.c.h.b16 %v1091
    %v1261 = vunpack.c.l.b16 %v1092
    %v1262 = vunpack.c.h.b16 %v1092
    %v1263 = vunpack.c.l.b16 %v1093
    %v1264 = vunpack.c.h.b16 %v1093
    %v1265 = vunpack.c.l.b16 %v1094
    %v1266 = vunpack.c.h.b16 %v1094
    %v1267 = vunpack.c.l.b16 %v1095
    %v1268 = vunpack.c.h.b16 %v1095
    %v1269 = vunpack.c.l.b16 %v1096
    %v1270 = vunpack.c.h.b16 %v1096
    %v1271 = vunpack.c.l.b16 %v1097
    %v1272 = vunpack.c.h.b16 %v1097
    %v1273 = vunpack.c.l.b16 %v1098
    %v1274 = vunpack.c.h.b16 %v1098
    %v1275 = vunpack.c.l.b16 %v1099
    %v1276 = vunpack.c.h.b16 %v1099
    %v1277 = vunpack.c.l.b16 %v1100
    %v1278 = vunpack.c.h.b16 %v1100
    %v1279 = vunpack.c.l.b16 %v1101
    %v1280 = vunpack.c.h.b16 %v1101
    %v1281 = vunpack.c.l.b16 %v1102
    %v1282 = vunpack.c.h.b16 %v1102
    %v1283 = vunpack.c.l.b16 %v1103
    %v1284 = vunpack.c.h.b16 %v1103
    %v1285 = vunpack.c.l.b16 %v1104
    %v1286 = vunpack.c.h.b16 %v1104
    %v1287 = vunpack.c.l.b16 %v1105
    %v1288 = vunpack.c.h.b16 %v1105
    %v1289 = vunpack.c.l.b16 %v1106
    %v1290 = vunpack.c.h.b16 %v1106
    %v1291 = vunpack.c.l.b16 %v1107
    %v1292 = vunpack.c.h.b16 %v1107
    %v1293 = vunpack.c.l.b16 %v1108
    %v1294 = vunpack.c.h.b16 %v1108
    %v1295 = vunpack.c.l.b16 %v1109
    %v1296 = vunpack.c.h.b16 %v1109
    %v1297 = vunpack.c.l.b16 %v1110
    %v1298 = vunpack.c.h.b16 %v1110
    %v1299 = vunpack.c.l.b16 %v1111
    %v1300 = vunpack.c.h.b16 %v1111
    %v1301 = vunpack.c.l.b16 %v1112
    %v1302 = vunpack.c.h.b16 %v1112
    %v1303 = vunpack.c.l.b16 %v1113
    %v1304 = vunpack.c.h.b16 %v1113
    %v1305 = vunpack.c.l.b16 %v1114
    %v1306 = vunpack.c.h.b16 %v1114
    %v1307 = vunpack.c.l.b16 %v1115
    %v1308 = vunpack.c.h.b16 %v1115
    %v1309 = vunpack.c.l.b16 %v1116
    %v1310 = vunpack.c.h.b16 %v1116
    %v1311 = vunpack.c.l.b16 %v1117
    %v1312 = vunpack.c.h.b16 %v1117
    %v1313 = vunpack.c.l.b16 %v1118
    %v1314 = vunpack.c.h.b16 %v1118
    %v1315 = vunpack.c.l.b16 %v1119
    %v1316 = vunpack.c.h.b16 %v1119
    %v1317 = vunpack.c.l.b16 %v1120
    %v1318 = vunpack.c.h.b16 %v1120
    %v1319 = vunpack.c.l.b16 %v1121
    %v1320 = vunpack.c.h.b16 %v1121
    %v1321 = vunpack.c.l.b16 %v1122
    %v1322 = vunpack.c.h.b16 %v1122
    %v1323 = vunpack.c.l.b16 %v1123
    %v1324 = vunpack.c.h.b16 %v1123
    %v1325 = vunpack.c.l.b16 %v1124
    %v1326 = vunpack.c.h.b16 %v1124
    %v1327 = vunpack.c.l.b16 %v1125
    %v1328 = vunpack.c.h.b16 %v1125
    %v1329 = vunpack.c.l.b16 %v1126
    %v1330 = vunpack.c.h.b16 %v1126
    %v1331 = vunpack.c.l.b16 %v1127
    %v1332 = vunpack.c.h.b16 %v1127
    %v1333 = vunpack.c.l.b16 %v1128
    %v1334 = vunpack.c.h.b16 %v1128
    %v1335 = vunpack.c.l.b16 %v1129
    %v1336 = vunpack.c.h.b16 %v1129
    %v1337 = vunpack.c.l.b16 %v1130
    %v1338 = vunpack.c.h.b16 %v1130
    %v1339 = vunpack.c.l.b16 %v1131
    %v1340 = vunpack.c.h.b16 %v1131
    %v1341 = vunpack.c.l.b16 %v1132
    %v1342 = vunpack.c.h.b16 %v1132
    %v1343 = vunpack.c.l.b16 %v1133
    %v1344 = vunpack.c.h.b16 %v1133
    %v1345 = vunpack.c.l.b16 %v1134
    %v1346 = vunpack.c.h.b16 %v1134
    %v1347 = vunpack.c.l.b16 %v1135
    %v1348 = vunpack.c.h.b16 %v1135
    %v1349 = vunpack.c.l.b16 %v1136
    %v1350 = vunpack.c.h.b16 %v1136
    %v1351 = vpack.c.b16 %v1227, %v1223
    %v1352 = vpack.c.b16 %v1228, %v1224
    %v1353 = vpack.c.b16 %v1229, %v1225
    %v1354 = vpack.c.b16 %v1230, %v1226
    %v1355 = vpack.c.b16 %v1235, %v1231
    %v1356 = vpack.c.b16 %v1236, %v1232
    %v1357 = vpack.c.b16 %v1237, %v1233
    %v1358 = vpack.c.b16 %v1238, %v1234
    %v1359 = vpack.c.b16 %v1243, %v1239
    %v1360 = vpack.c.b16 %v1244, %v1240
    %v1361 = vpack.c.b16 %v1245, %v1241
    %v1362 = vpack.c.b16 %v1246, %v1242
    %v1363 = vpack.c.b16 %v1251, %v1247
    %v1364 = vpack.c.b16 %v1252, %v1248
    %v1365 = vpack.c.b16 %v1253, %v1249
    %v1366 = vpack.c.b16 %v1254, %v1250
    %v1367 = vpack.c.b16 %v1259, %v1255
    %v1368 = vpack.c.b16 %v1260, %v1256
    %v1369 = vpack.c.b16 %v1261, %v1257
    %v1370 = vpack.c.b16 %v1262, %v1258
    %v1371 = vpack.c.b16 %v1267, %v1263
    %v1372 = vpack.c.b16 %v1268, %v1264
    %v1373 = vpack.c.b16 %v1269, %v1265
    %v1374 = vpack.c.b16 %v1270, %v1266
    %v1375 = vpack.c.b16 %v1275, %v1271
    %v1376 = vpack.c.b16 %v1276, %v1272
    %v1377 = vpack.c.b16 %v1277, %v1273
    %v1378 = vpack.c.b16 %v1278, %v1274
    %v1379 = vpack.c.b16 %v1283, %v1279
    %v1380 = vpack.c.b16 %v1284, %v1280
    %v1381 = vpack.c.b16 %v1285, %v1281
    %v1382 = vpack.c.b16 %v1286, %v1282
    %v1383 = vpack.c.b16 %v1291, %v1287
    %v1384 = vpack.c.b16 %v1292, %v1288
    %v1385 = vpack.c.b16 %v1293, %v1289
    %v1386 = vpack.c.b16 %v1294, %v1290
    %v1387 = vpack.c.b16 %v1299, %v1295
    %v1388 = vpack.c.b16 %v1300, %v1296
    %v1389 = vpack.c.b16 %v1301, %v1297
    %v1390 = vpack.c.b16 %v1302, %v1298
    %v1391 = vpack.c.b16 %v1307, %v1303
    %v1392 = vpack.c.b16 %v1308, %v1304
    %v1393 = vpack.c.b16 %v1309, %v1305
    %v1394 = vpack.c.b16 %v1310, %v1306
    %v1395 = vpack.c.b16 %v1315, %v1311
    %v1396 = vpack.c.b16 %v1316, %v1312
    %v1397 = vpack.c.b16 %v1317, %v1313
    %v1398 = vpack.c.b16 %v1318, %v1314
    %v1399 = vpack.c.b16 %v1323, %v1319
    %v1400 = vpack.c.b16 %v1324, %v1320
    %v1401 = vpack.c.b16 %v1325, %v1321
    %v1402 = vpack.c.b16 %v1326, %v1322
    %v1403 = vpack.c.b16 %v1331, %v1327
    %v1404 = vpack.c.b16 %v1332, %v1328
    %v1405 = vpack.c.b16 %v1333, %v1329
    %v1406 = vpack.c.b16 %v1334, %v1330
    %v1407 = vpack.c.b16 %v1339, %v1335
    %v1408 = vpack.c.b16 %v1340, %v1336
    %v1409 = vpack.c.b16 %v1341, %v1337
    %v1410 = vpack.c.b16 %v1342, %v1338
    %v1411 = vpack.c.b16 %v1347, %v1343
    %v1412 = vpack.c.b16 %v1348, %v1344
    %v1413 = vpack.c.b16 %v1349, %v1345
    %v1414 = vpack.c.b16 %v1350, %v1346
    %1479 = vmatprep.subr.bf16.mxu0 %v1352
    %1480 = vmatpush1.bf16.msra.mxu0 %v1351
    %1481 = vmatprep.subr.bf16.mxu0 %v1356
    %1482 = vmatpush1.bf16.msra.mxu0 %v1355
    %1483 = vmatprep.subr.bf16.mxu0 %v1360
    %1484 = vmatpush1.bf16.msra.mxu0 %v1359
    %1485 = vmatprep.subr.bf16.mxu0 %v1364
    %1486 = vmatpush1.bf16.msra.mxu0 %v1363
    %1487 = vmatprep.subr.bf16.mxu0 %v1368
    %1488 = vmatpush1.bf16.msra.mxu0 %v1367
    %1489 = vmatprep.subr.bf16.mxu0 %v1372
    %1490 = vmatpush1.bf16.msra.mxu0 %v1371
    %1491 = vmatprep.subr.bf16.mxu0 %v1376
    %1492 = vmatpush1.bf16.msra.mxu0 %v1375
    %1493 = vmatprep.subr.bf16.mxu0 %v1380
    %1494 = vmatpush1.bf16.msra.mxu0 %v1379
    %1495 = vmatprep.subr.bf16.mxu0 %v1384
    %1496 = vmatpush1.bf16.msra.mxu0 %v1383
    %1497 = vmatprep.subr.bf16.mxu0 %v1388
    %1498 = vmatpush1.bf16.msra.mxu0 %v1387
    %1499 = vmatprep.subr.bf16.mxu0 %v1392
    %1500 = vmatpush1.bf16.msra.mxu0 %v1391
    %1501 = vmatprep.subr.bf16.mxu0 %v1396
    %1502 = vmatpush1.bf16.msra.mxu0 %v1395
    %1503 = vmatprep.subr.bf16.mxu0 %v1400
    %1504 = vmatpush1.bf16.msra.mxu0 %v1399
    %1505 = vmatprep.subr.bf16.mxu0 %v1404
    %1506 = vmatpush1.bf16.msra.mxu0 %v1403
    %1507 = vmatprep.subr.bf16.mxu0 %v1408
    %1508 = vmatpush1.bf16.msra.mxu0 %v1407
    %1509 = vmatprep.subr.bf16.mxu0 %v1412
    %1510 = vmatpush1.bf16.msra.mxu0 %v1411
    %1511 = vmatprep.mubr.bf16.mxu0 %v1042
    %1512 = vmatmul.mubr.bf16.gmra.mrb[0].mxu0 %v1041
    %v1513 = vpop.f32.mrb[0].mxu0
    %v1514 = vadd.f32 %v1142, %v1513
    %v1515 = vpop.f32.mrb[0].mxu0
    %v1516 = vadd.f32 %v1146, %v1515
    %v1517 = vpop.f32.mrb[0].mxu0
    %v1518 = vadd.f32 %v1142, %v1517
    %v1519 = vpop.f32.mrb[0].mxu0
    %v1520 = vadd.f32 %v1146, %v1519
    %1521 = vmatprep.mubr.bf16.mxu0 %v1044
    %1522 = vmatmul.mubr.bf16.gmra.mrb[0].mxu0 %v1043
    %v1523 = vpop.f32.mrb[0].mxu0
    %v1524 = vadd.f32 %v1142, %v1523
    %v1525 = vpop.f32.mrb[0].mxu0
    %v1526 = vadd.f32 %v1146, %v1525
    %v1527 = vpop.f32.mrb[0].mxu0
    %v1528 = vadd.f32 %v1142, %v1527
    %v1529 = vpop.f32.mrb[0].mxu0
    %v1530 = vadd.f32 %v1146, %v1529
    %1531 = vmatprep.mubr.bf16.mxu0 %v1046
    %1532 = vmatmul.mubr.bf16.gmra.mrb[0].mxu0 %v1045
    %v1533 = vpop.f32.mrb[0].mxu0
    %v1534 = vadd.f32 %v1142, %v1533
    %v1535 = vpop.f32.mrb[0].mxu0
    %v1536 = vadd.f32 %v1146, %v1535
    %v1537 = vpop.f32.mrb[0].mxu0
    %v1538 = vadd.f32 %v1142, %v1537
    %v1539 = vpop.f32.mrb[0].mxu0
    %v1540 = vadd.f32 %v1146, %v1539
    %1541 = vmatprep.mubr.bf16.mxu0 %v1048
    %1542 = vmatmul.mubr.bf16.gmra.mrb[0].mxu0 %v1047
    %v1543 = vpop.f32.mrb[0].mxu0
    %v1544 = vadd.f32 %v1142, %v1543
    %v1545 = vpop.f32.mrb[0].mxu0
    %v1546 = vadd.f32 %v1146, %v1545
    %v1547 = vpop.f32.mrb[0].mxu0
    %v1548 = vadd.f32 %v1142, %v1547
    %v1549 = vpop.f32.mrb[0].mxu0
    %v1550 = vadd.f32 %v1146, %v1549
    %1551 = vmatprep.mubr.bf16.mxu0 %v1050
    %1552 = vmatmul.mubr.bf16.gmra.mrb[0].mxu0 %v1049
    %v1553 = vpop.f32.mrb[0].mxu0
    %v1554 = vadd.f32 %v1142, %v1553
    %v1555 = vpop.f32.mrb[0].mxu0
    %v1556 = vadd.f32 %v1146, %v1555
    %v1557 = vpop.f32.mrb[0].mxu0
    %v1558 = vadd.f32 %v1142, %v1557
    %v1559 = vpop.f32.mrb[0].mxu0
    %v1560 = vadd.f32 %v1146, %v1559
    %1561 = vmatprep.mubr.bf16.mxu0 %v1052
    %1562 = vmatmul.mubr.bf16.gmra.mrb[0].mxu0 %v1051
    %v1563 = vpop.f32.mrb[0].mxu0
    %v1564 = vadd.f32 %v1142, %v1563
    %v1565 = vpop.f32.mrb[0].mxu0
    %v1566 = vadd.f32 %v1146, %v1565
    %v1567 = vpop.f32.mrb[0].mxu0
    %v1568 = vadd.f32 %v1142, %v1567
    %v1569 = vpop.f32.mrb[0].mxu0
    %v1570 = vadd.f32 %v1146, %v1569
    %1571 = vmatprep.mubr.bf16.mxu0 %v1054
    %1572 = vmatmul.mubr.bf16.gmra.mrb[0].mxu0 %v1053
    %v1573 = vpop.f32.mrb[0].mxu0
    %v1574 = vadd.f32 %v1142, %v1573
    %v1575 = vpop.f32.mrb[0].mxu0
    %v1576 = vadd.f32 %v1146, %v1575
    %v1577 = vpop.f32.mrb[0].mxu0
    %v1578 = vadd.f32 %v1142, %v1577
    %v1579 = vpop.f32.mrb[0].mxu0
    %v1580 = vadd.f32 %v1146, %v1579
    %1581 = vmatprep.mubr.bf16.mxu0 %v1056
    %1582 = vmatmul.mubr.bf16.gmra.mrb[0].mxu0 %v1055
    %v1583 = vpop.f32.mrb[0].mxu0
    %v1584 = vadd.f32 %v1142, %v1583
    %v1585 = vpop.f32.mrb[0].mxu0
    %v1586 = vadd.f32 %v1146, %v1585
    %v1587 = vpop.f32.mrb[0].mxu0
    %v1588 = vadd.f32 %v1142, %v1587
    %v1589 = vpop.f32.mrb[0].mxu0
    %v1590 = vadd.f32 %v1146, %v1589
    %1591 = vmatprep.mubr.bf16.mxu0 %v1058
    %1592 = vmatmul.mubr.bf16.gmra.mrb[0].mxu0 %v1057
    %v1593 = vpop.f32.mrb[0].mxu0
    %v1594 = vadd.f32 %v1142, %v1593
    %v1595 = vpop.f32.mrb[0].mxu0
    %v1596 = vadd.f32 %v1146, %v1595
    %v1597 = vpop.f32.mrb[0].mxu0
    %v1598 = vadd.f32 %v1142, %v1597
    %v1599 = vpop.f32.mrb[0].mxu0
    %v1600 = vadd.f32 %v1146, %v1599
    %1601 = vmatprep.mubr.bf16.mxu0 %v1060
    %1602 = vmatmul.mubr.bf16.gmra.mrb[0].mxu0 %v1059
    %v1603 = vpop.f32.mrb[0].mxu0
    %v1604 = vadd.f32 %v1142, %v1603
    %v1605 = vpop.f32.mrb[0].mxu0
    %v1606 = vadd.f32 %v1146, %v1605
    %v1607 = vpop.f32.mrb[0].mxu0
    %v1608 = vadd.f32 %v1142, %v1607
    %v1609 = vpop.f32.mrb[0].mxu0
    %v1610 = vadd.f32 %v1146, %v1609
    %1611 = vmatprep.mubr.bf16.mxu0 %v1062
    %1612 = vmatmul.mubr.bf16.gmra.mrb[0].mxu0 %v1061
    %v1613 = vpop.f32.mrb[0].mxu0
    %v1614 = vadd.f32 %v1142, %v1613
    %v1615 = vpop.f32.mrb[0].mxu0
    %v1616 = vadd.f32 %v1146, %v1615
    %v1617 = vpop.f32.mrb[0].mxu0
    %v1618 = vadd.f32 %v1142, %v1617
    %v1619 = vpop.f32.mrb[0].mxu0
    %v1620 = vadd.f32 %v1146, %v1619
    %1621 = vmatprep.mubr.bf16.mxu0 %v1064
    %1622 = vmatmul.mubr.bf16.gmra.mrb[0].mxu0 %v1063
    %v1623 = vpop.f32.mrb[0].mxu0
    %v1624 = vadd.f32 %v1142, %v1623
    %v1625 = vpop.f32.mrb[0].mxu0
    %v1626 = vadd.f32 %v1146, %v1625
    %v1627 = vpop.f32.mrb[0].mxu0
    %v1628 = vadd.f32 %v1142, %v1627
    %v1629 = vpop.f32.mrb[0].mxu0
    %v1630 = vadd.f32 %v1146, %v1629
    %1631 = vmatprep.mubr.bf16.mxu0 %v1066
    %1632 = vmatmul.mubr.bf16.gmra.mrb[0].mxu0 %v1065
    %v1633 = vpop.f32.mrb[0].mxu0
    %v1634 = vadd.f32 %v1142, %v1633
    %v1635 = vpop.f32.mrb[0].mxu0
    %v1636 = vadd.f32 %v1146, %v1635
    %v1637 = vpop.f32.mrb[0].mxu0
    %v1638 = vadd.f32 %v1142, %v1637
    %v1639 = vpop.f32.mrb[0].mxu0
    %v1640 = vadd.f32 %v1146, %v1639
    %1641 = vmatprep.mubr.bf16.mxu0 %v1068
    %1642 = vmatmul.mubr.bf16.gmra.mrb[0].mxu0 %v1067
    %v1643 = vpop.f32.mrb[0].mxu0
    %v1644 = vadd.f32 %v1142, %v1643
    %v1645 = vpop.f32.mrb[0].mxu0
    %v1646 = vadd.f32 %v1146, %v1645
    %v1647 = vpop.f32.mrb[0].mxu0
    %v1648 = vadd.f32 %v1142, %v1647
    %v1649 = vpop.f32.mrb[0].mxu0
    %v1650 = vadd.f32 %v1146, %v1649
    %1651 = vmatprep.mubr.bf16.mxu0 %v1070
    %1652 = vmatmul.mubr.bf16.gmra.mrb[0].mxu0 %v1069
    %v1653 = vpop.f32.mrb[0].mxu0
    %v1654 = vadd.f32 %v1142, %v1653
    %v1655 = vpop.f32.mrb[0].mxu0
    %v1656 = vadd.f32 %v1146, %v1655
    %v1657 = vpop.f32.mrb[0].mxu0
    %v1658 = vadd.f32 %v1142, %v1657
    %v1659 = vpop.f32.mrb[0].mxu0
    %v1660 = vadd.f32 %v1146, %v1659
    %1661 = vmatprep.mubr.bf16.mxu0 %v1072
    %1662 = vmatmul.mubr.bf16.gmra.mrb[0].mxu0 %v1071
    %v1663 = vpop.f32.mrb[0].mxu0
    %v1664 = vadd.f32 %v1142, %v1663
    %v1665 = vpop.f32.mrb[0].mxu0
    %v1666 = vadd.f32 %v1146, %v1665
    %v1667 = vpop.f32.mrb[0].mxu0
    %v1668 = vadd.f32 %v1142, %v1667
    %v1669 = vpop.f32.mrb[0].mxu0
    %v1670 = vadd.f32 %v1146, %v1669
    %1671 = vdwg.mxu0
    %1672 = vmatprep.subr.bf16.mxu0 %v1354
    %1673 = vmatpush1.bf16.msra.mxu0 %v1353
    %1674 = vmatprep.subr.bf16.mxu0 %v1358
    %1675 = vmatpush1.bf16.msra.mxu0 %v1357
    %1676 = vmatprep.subr.bf16.mxu0 %v1362
    %1677 = vmatpush1.bf16.msra.mxu0 %v1361
    %1678 = vmatprep.subr.bf16.mxu0 %v1366
    %1679 = vmatpush1.bf16.msra.mxu0 %v1365
    %1680 = vmatprep.subr.bf16.mxu0 %v1370
    %1681 = vmatpush1.bf16.msra.mxu0 %v1369
    %1682 = vmatprep.subr.bf16.mxu0 %v1374
    %1683 = vmatpush1.bf16.msra.mxu0 %v1373
    %1684 = vmatprep.subr.bf16.mxu0 %v1378
    %1685 = vmatpush1.bf16.msra.mxu0 %v1377
    %1686 = vmatprep.subr.bf16.mxu0 %v1382
    %1687 = vmatpush1.bf16.msra.mxu0 %v1381
    %1688 = vmatprep.subr.bf16.mxu0 %v1386
    %1689 = vmatpush1.bf16.msra.mxu0 %v1385
    %1690 = vmatprep.subr.bf16.mxu0 %v1390
    %1691 = vmatpush1.bf16.msra.mxu0 %v1389
    %1692 = vmatprep.subr.bf16.mxu0 %v1394
    %1693 = vmatpush1.bf16.msra.mxu0 %v1393
    %1694 = vmatprep.subr.bf16.mxu0 %v1398
    %1695 = vmatpush1.bf16.msra.mxu0 %v1397
    %1696 = vmatprep.subr.bf16.mxu0 %v1402
    %1697 = vmatpush1.bf16.msra.mxu0 %v1401
    %1698 = vmatprep.subr.bf16.mxu0 %v1406
    %1699 = vmatpush1.bf16.msra.mxu0 %v1405
    %1700 = vmatprep.subr.bf16.mxu0 %v1410
    %1701 = vmatpush1.bf16.msra.mxu0 %v1409
    %1702 = vmatprep.subr.bf16.mxu0 %v1414
    %1703 = vmatpush1.bf16.msra.mxu0 %v1413
    %1704 = vmatprep.mubr.bf16.mxu0 %v1042
    %1705 = vmatmul.mubr.bf16.gmra.mrb[0].mxu0 %v1041
    %v1706 = vpop.f32.mrb[0].mxu0
    %v1707 = vadd.f32 %v1150, %v1706
    %v1708 = vpop.f32.mrb[0].mxu0
    %v1709 = vadd.f32 %v1154, %v1708
    %v1710 = vpop.f32.mrb[0].mxu0
    %v1711 = vadd.f32 %v1150, %v1710
    %v1712 = vpop.f32.mrb[0].mxu0
    %v1713 = vadd.f32 %v1154, %v1712
    %1714 = vmatprep.mubr.bf16.mxu0 %v1044
    %1715 = vmatmul.mubr.bf16.gmra.mrb[0].mxu0 %v1043
    %v1716 = vpop.f32.mrb[0].mxu0
    %v1717 = vadd.f32 %v1150, %v1716
    %v1718 = vpop.f32.mrb[0].mxu0
    %v1719 = vadd.f32 %v1154, %v1718
    %v1720 = vpop.f32.mrb[0].mxu0
    %v1721 = vadd.f32 %v1150, %v1720
    %v1722 = vpop.f32.mrb[0].mxu0
    %v1723 = vadd.f32 %v1154, %v1722
    %1724 = vmatprep.mubr.bf16.mxu0 %v1046
    %1725 = vmatmul.mubr.bf16.gmra.mrb[0].mxu0 %v1045
    %v1726 = vpop.f32.mrb[0].mxu0
    %v1727 = vadd.f32 %v1150, %v1726
    %v1728 = vpop.f32.mrb[0].mxu0
    %v1729 = vadd.f32 %v1154, %v1728
    %v1730 = vpop.f32.mrb[0].mxu0
    %v1731 = vadd.f32 %v1150, %v1730
    %v1732 = vpop.f32.mrb[0].mxu0
    %v1733 = vadd.f32 %v1154, %v1732
    %1734 = vmatprep.mubr.bf16.mxu0 %v1048
    %1735 = vmatmul.mubr.bf16.gmra.mrb[0].mxu0 %v1047
    %v1736 = vpop.f32.mrb[0].mxu0
    %v1737 = vadd.f32 %v1150, %v1736
    %v1738 = vpop.f32.mrb[0].mxu0
    %v1739 = vadd.f32 %v1154, %v1738
    %v1740 = vpop.f32.mrb[0].mxu0
    %v1741 = vadd.f32 %v1150, %v1740
    %v1742 = vpop.f32.mrb[0].mxu0
    %v1743 = vadd.f32 %v1154, %v1742
    %1744 = vmatprep.mubr.bf16.mxu0 %v1050
    %1745 = vmatmul.mubr.bf16.gmra.mrb[0].mxu0 %v1049
    %v1746 = vpop.f32.mrb[0].mxu0
    %v1747 = vadd.f32 %v1150, %v1746
    %v1748 = vpop.f32.mrb[0].mxu0
    %v1749 = vadd.f32 %v1154, %v1748
    %v1750 = vpop.f32.mrb[0].mxu0
    %v1751 = vadd.f32 %v1150, %v1750
    %v1752 = vpop.f32.mrb[0].mxu0
    %v1753 = vadd.f32 %v1154, %v1752
    %1754 = vmatprep.mubr.bf16.mxu0 %v1052
    %1755 = vmatmul.mubr.bf16.gmra.mrb[0].mxu0 %v1051
    %v1756 = vpop.f32.mrb[0].mxu0
    %v1757 = vadd.f32 %v1150, %v1756
    %v1758 = vpop.f32.mrb[0].mxu0
    %v1759 = vadd.f32 %v1154, %v1758
    %v1760 = vpop.f32.mrb[0].mxu0
    %v1761 = vadd.f32 %v1150, %v1760
    %v1762 = vpop.f32.mrb[0].mxu0
    %v1763 = vadd.f32 %v1154, %v1762
    %1764 = vmatprep.mubr.bf16.mxu0 %v1054
    %1765 = vmatmul.mubr.bf16.gmra.mrb[0].mxu0 %v1053
    %v1766 = vpop.f32.mrb[0].mxu0
    %v1767 = vadd.f32 %v1150, %v1766
    %v1768 = vpop.f32.mrb[0].mxu0
    %v1769 = vadd.f32 %v1154, %v1768
    %v1770 = vpop.f32.mrb[0].mxu0
    %v1771 = vadd.f32 %v1150, %v1770
    %v1772 = vpop.f32.mrb[0].mxu0
    %v1773 = vadd.f32 %v1154, %v1772
    %1774 = vmatprep.mubr.bf16.mxu0 %v1056
    %1775 = vmatmul.mubr.bf16.gmra.mrb[0].mxu0 %v1055
    %v1776 = vpop.f32.mrb[0].mxu0
    %v1777 = vadd.f32 %v1150, %v1776
    %v1778 = vpop.f32.mrb[0].mxu0
    %v1779 = vadd.f32 %v1154, %v1778
    %v1780 = vpop.f32.mrb[0].mxu0
    %v1781 = vadd.f32 %v1150, %v1780
    %v1782 = vpop.f32.mrb[0].mxu0
    %v1783 = vadd.f32 %v1154, %v1782
    %1784 = vmatprep.mubr.bf16.mxu0 %v1058
    %1785 = vmatmul.mubr.bf16.gmra.mrb[0].mxu0 %v1057
    %v1786 = vpop.f32.mrb[0].mxu0
    %v1787 = vadd.f32 %v1150, %v1786
    %v1788 = vpop.f32.mrb[0].mxu0
    %v1789 = vadd.f32 %v1154, %v1788
    %v1790 = vpop.f32.mrb[0].mxu0
    %v1791 = vadd.f32 %v1150, %v1790
    %v1792 = vpop.f32.mrb[0].mxu0
    %v1793 = vadd.f32 %v1154, %v1792
    %1794 = vmatprep.mubr.bf16.mxu0 %v1060
    %1795 = vmatmul.mubr.bf16.gmra.mrb[0].mxu0 %v1059
    %v1796 = vpop.f32.mrb[0].mxu0
    %v1797 = vadd.f32 %v1150, %v1796
    %v1798 = vpop.f32.mrb[0].mxu0
    %v1799 = vadd.f32 %v1154, %v1798
    %v1800 = vpop.f32.mrb[0].mxu0
    %v1801 = vadd.f32 %v1150, %v1800
    %v1802 = vpop.f32.mrb[0].mxu0
    %v1803 = vadd.f32 %v1154, %v1802
    %1804 = vmatprep.mubr.bf16.mxu0 %v1062
    %1805 = vmatmul.mubr.bf16.gmra.mrb[0].mxu0 %v1061
    %v1806 = vpop.f32.mrb[0].mxu0
    %v1807 = vadd.f32 %v1150, %v1806
    %v1808 = vpop.f32.mrb[0].mxu0
    %v1809 = vadd.f32 %v1154, %v1808
    %v1810 = vpop.f32.mrb[0].mxu0
    %v1811 = vadd.f32 %v1150, %v1810
    %v1812 = vpop.f32.mrb[0].mxu0
    %v1813 = vadd.f32 %v1154, %v1812
    %1814 = vmatprep.mubr.bf16.mxu0 %v1064
    %1815 = vmatmul.mubr.bf16.gmra.mrb[0].mxu0 %v1063
    %v1816 = vpop.f32.mrb[0].mxu0
    %v1817 = vadd.f32 %v1150, %v1816
    %v1818 = vpop.f32.mrb[0].mxu0
    %v1819 = vadd.f32 %v1154, %v1818
    %v1820 = vpop.f32.mrb[0].mxu0
    %v1821 = vadd.f32 %v1150, %v1820
    %v1822 = vpop.f32.mrb[0].mxu0
    %v1823 = vadd.f32 %v1154, %v1822
    %1824 = vmatprep.mubr.bf16.mxu0 %v1066
    %1825 = vmatmul.mubr.bf16.gmra.mrb[0].mxu0 %v1065
    %v1826 = vpop.f32.mrb[0].mxu0
    %v1827 = vadd.f32 %v1150, %v1826
    %v1828 = vpop.f32.mrb[0].mxu0
    %v1829 = vadd.f32 %v1154, %v1828
    %v1830 = vpop.f32.mrb[0].mxu0
    %v1831 = vadd.f32 %v1150, %v1830
    %v1832 = vpop.f32.mrb[0].mxu0
    %v1833 = vadd.f32 %v1154, %v1832
    %1834 = vmatprep.mubr.bf16.mxu0 %v1068
    %1835 = vmatmul.mubr.bf16.gmra.mrb[0].mxu0 %v1067
    %v1836 = vpop.f32.mrb[0].mxu0
    %v1837 = vadd.f32 %v1150, %v1836
    %v1838 = vpop.f32.mrb[0].mxu0
    %v1839 = vadd.f32 %v1154, %v1838
    %v1840 = vpop.f32.mrb[0].mxu0
    %v1841 = vadd.f32 %v1150, %v1840
    %v1842 = vpop.f32.mrb[0].mxu0
    %v1843 = vadd.f32 %v1154, %v1842
    %1844 = vmatprep.mubr.bf16.mxu0 %v1070
    %1845 = vmatmul.mubr.bf16.gmra.mrb[0].mxu0 %v1069
    %v1846 = vpop.f32.mrb[0].mxu0
    %v1847 = vadd.f32 %v1150, %v1846
    %v1848 = vpop.f32.mrb[0].mxu0
    %v1849 = vadd.f32 %v1154, %v1848
    %v1850 = vpop.f32.mrb[0].mxu0
    %v1851 = vadd.f32 %v1150, %v1850
    %v1852 = vpop.f32.mrb[0].mxu0
    %v1853 = vadd.f32 %v1154, %v1852
    %1854 = vmatprep.mubr.bf16.mxu0 %v1072
    %1855 = vmatmul.mubr.bf16.gmra.mrb[0].mxu0 %v1071
    %v1856 = vpop.f32.mrb[0].mxu0
    %v1857 = vadd.f32 %v1150, %v1856
    %v1858 = vpop.f32.mrb[0].mxu0
    %v1859 = vadd.f32 %v1154, %v1858
    %v1860 = vpop.f32.mrb[0].mxu0
    %v1861 = vadd.f32 %v1150, %v1860
    %v1862 = vpop.f32.mrb[0].mxu0
    %v1863 = vadd.f32 %v1154, %v1862
    %1864 = vdwg.mxu0
    %v1865 = vmax.f32 %v1514, 0.0
    %v1866 = vmax.f32 %v1516, 0.0
    %v1867 = vmax.f32 %v1707, 0.0
    %v1868 = vmax.f32 %v1709, 0.0
    %v1869 = vmax.f32 %v1518, 0.0
    %v1870 = vmax.f32 %v1520, 0.0
    %v1871 = vmax.f32 %v1711, 0.0
    %v1872 = vmax.f32 %v1713, 0.0
    %v1873 = vmax.f32 %v1524, 0.0
    %v1874 = vmax.f32 %v1526, 0.0
    %v1875 = vmax.f32 %v1717, 0.0
    %v1876 = vmax.f32 %v1719, 0.0
    %v1877 = vmax.f32 %v1528, 0.0
    %v1878 = vmax.f32 %v1530, 0.0
    %v1879 = vmax.f32 %v1721, 0.0
    %v1880 = vmax.f32 %v1723, 0.0
    %v1881 = vmax.f32 %v1534, 0.0
    %v1882 = vmax.f32 %v1536, 0.0
    %v1883 = vmax.f32 %v1727, 0.0
    %v1884 = vmax.f32 %v1729, 0.0
    %v1885 = vmax.f32 %v1538, 0.0
    %v1886 = vmax.f32 %v1540, 0.0
    %v1887 = vmax.f32 %v1731, 0.0
    %v1888 = vmax.f32 %v1733, 0.0
    %v1889 = vmax.f32 %v1544, 0.0
    %v1890 = vmax.f32 %v1546, 0.0
    %v1891 = vmax.f32 %v1737, 0.0
    %v1892 = vmax.f32 %v1739, 0.0
    %v1893 = vmax.f32 %v1548, 0.0
    %v1894 = vmax.f32 %v1550, 0.0
    %v1895 = vmax.f32 %v1741, 0.0
    %v1896 = vmax.f32 %v1743, 0.0
    %v1897 = vmax.f32 %v1554, 0.0
    %v1898 = vmax.f32 %v1556, 0.0
    %v1899 = vmax.f32 %v1747, 0.0
    %v1900 = vmax.f32 %v1749, 0.0
    %v1901 = vmax.f32 %v1558, 0.0
    %v1902 = vmax.f32 %v1560, 0.0
    %v1903 = vmax.f32 %v1751, 0.0
    %v1904 = vmax.f32 %v1753, 0.0
    %v1905 = vmax.f32 %v1564, 0.0
    %v1906 = vmax.f32 %v1566, 0.0
    %v1907 = vmax.f32 %v1757, 0.0
    %v1908 = vmax.f32 %v1759, 0.0
    %v1909 = vmax.f32 %v1568, 0.0
    %v1910 = vmax.f32 %v1570, 0.0
    %v1911 = vmax.f32 %v1761, 0.0
    %v1912 = vmax.f32 %v1763, 0.0
    %v1913 = vmax.f32 %v1574, 0.0
    %v1914 = vmax.f32 %v1576, 0.0
    %v1915 = vmax.f32 %v1767, 0.0
    %v1916 = vmax.f32 %v1769, 0.0
    %v1917 = vmax.f32 %v1578, 0.0
    %v1918 = vmax.f32 %v1580, 0.0
    %v1919 = vmax.f32 %v1771, 0.0
    %v1920 = vmax.f32 %v1773, 0.0
    %v1921 = vmax.f32 %v1584, 0.0
    %v1922 = vmax.f32 %v1586, 0.0
    %v1923 = vmax.f32 %v1777, 0.0
    %v1924 = vmax.f32 %v1779, 0.0
    %v1925 = vmax.f32 %v1588, 0.0
    %v1926 = vmax.f32 %v1590, 0.0
    %v1927 = vmax.f32 %v1781, 0.0
    %v1928 = vmax.f32 %v1783, 0.0
    %v1929 = vmax.f32 %v1594, 0.0
    %v1930 = vmax.f32 %v1596, 0.0
    %v1931 = vmax.f32 %v1787, 0.0
    %v1932 = vmax.f32 %v1789, 0.0
    %v1933 = vmax.f32 %v1598, 0.0
    %v1934 = vmax.f32 %v1600, 0.0
    %v1935 = vmax.f32 %v1791, 0.0
    %v1936 = vmax.f32 %v1793, 0.0
    %v1937 = vmax.f32 %v1604, 0.0
    %v1938 = vmax.f32 %v1606, 0.0
    %v1939 = vmax.f32 %v1797, 0.0
    %v1940 = vmax.f32 %v1799, 0.0
    %v1941 = vmax.f32 %v1608, 0.0
    %v1942 = vmax.f32 %v1610, 0.0
    %v1943 = vmax.f32 %v1801, 0.0
    %v1944 = vmax.f32 %v1803, 0.0
    %v1945 = vmax.f32 %v1614, 0.0
    %v1946 = vmax.f32 %v1616, 0.0
    %v1947 = vmax.f32 %v1807, 0.0
    %v1948 = vmax.f32 %v1809, 0.0
    %v1949 = vmax.f32 %v1618, 0.0
    %v1950 = vmax.f32 %v1620, 0.0
    %v1951 = vmax.f32 %v1811, 0.0
    %v1952 = vmax.f32 %v1813, 0.0
    %v1953 = vmax.f32 %v1624, 0.0
    %v1954 = vmax.f32 %v1626, 0.0
    %v1955 = vmax.f32 %v1817, 0.0
    %v1956 = vmax.f32 %v1819, 0.0
    %v1957 = vmax.f32 %v1628, 0.0
    %v1958 = vmax.f32 %v1630, 0.0
    %v1959 = vmax.f32 %v1821, 0.0
    %v1960 = vmax.f32 %v1823, 0.0
    %v1961 = vmax.f32 %v1634, 0.0
    %v1962 = vmax.f32 %v1636, 0.0
    %v1963 = vmax.f32 %v1827, 0.0
    %v1964 = vmax.f32 %v1829, 0.0
    %v1965 = vmax.f32 %v1638, 0.0
    %v1966 = vmax.f32 %v1640, 0.0
    %v1967 = vmax.f32 %v1831, 0.0
    %v1968 = vmax.f32 %v1833, 0.0
    %v1969 = vmax.f32 %v1644, 0.0
    %v1970 = vmax.f32 %v1646, 0.0
    %v1971 = vmax.f32 %v1837, 0.0
    %v1972 = vmax.f32 %v1839, 0.0
    %v1973 = vmax.f32 %v1648, 0.0
    %v1974 = vmax.f32 %v1650, 0.0
    %v1975 = vmax.f32 %v1841, 0.0
    %v1976 = vmax.f32 %v1843, 0.0
    %v1977 = vmax.f32 %v1654, 0.0
    %v1978 = vmax.f32 %v1656, 0.0
    %v1979 = vmax.f32 %v1847, 0.0
    %v1980 = vmax.f32 %v1849, 0.0
    %v1981 = vmax.f32 %v1658, 0.0
    %v1982 = vmax.f32 %v1660, 0.0
    %v1983 = vmax.f32 %v1851, 0.0
    %v1984 = vmax.f32 %v1853, 0.0
    %v1985 = vmax.f32 %v1664, 0.0
    %v1986 = vmax.f32 %v1666, 0.0
    %v1987 = vmax.f32 %v1857, 0.0
    %v1988 = vmax.f32 %v1859, 0.0
    %v1989 = vmax.f32 %v1668, 0.0
    %v1990 = vmax.f32 %v1670, 0.0
    %v1991 = vmax.f32 %v1861, 0.0
    %v1992 = vmax.f32 %v1863, 0.0
    %v1993 = vpack.c.bf16 %v1869, %v1865
    %v1994 = vpack.c.bf16 %v1870, %v1866
    %v1995 = vpack.c.bf16 %v1871, %v1867
    %v1996 = vpack.c.bf16 %v1872, %v1868
    %v1997 = vpack.c.bf16 %v1877, %v1873
    %v1998 = vpack.c.bf16 %v1878, %v1874
    %v1999 = vpack.c.bf16 %v1879, %v1875
    %v2000 = vpack.c.bf16 %v1880, %v1876
    %v2001 = vpack.c.bf16 %v1885, %v1881
    %v2002 = vpack.c.bf16 %v1886, %v1882
    %v2003 = vpack.c.bf16 %v1887, %v1883
    %v2004 = vpack.c.bf16 %v1888, %v1884
    %v2005 = vpack.c.bf16 %v1893, %v1889
    %v2006 = vpack.c.bf16 %v1894, %v1890
    %v2007 = vpack.c.bf16 %v1895, %v1891
    %v2008 = vpack.c.bf16 %v1896, %v1892
    %v2009 = vpack.c.bf16 %v1901, %v1897
    %v2010 = vpack.c.bf16 %v1902, %v1898
    %v2011 = vpack.c.bf16 %v1903, %v1899
    %v2012 = vpack.c.bf16 %v1904, %v1900
    %v2013 = vpack.c.bf16 %v1909, %v1905
    %v2014 = vpack.c.bf16 %v1910, %v1906
    %v2015 = vpack.c.bf16 %v1911, %v1907
    %v2016 = vpack.c.bf16 %v1912, %v1908
    %v2017 = vpack.c.bf16 %v1917, %v1913
    %v2018 = vpack.c.bf16 %v1918, %v1914
    %v2019 = vpack.c.bf16 %v1919, %v1915
    %v2020 = vpack.c.bf16 %v1920, %v1916
    %v2021 = vpack.c.bf16 %v1925, %v1921
    %v2022 = vpack.c.bf16 %v1926, %v1922
    %v2023 = vpack.c.bf16 %v1927, %v1923
    %v2024 = vpack.c.bf16 %v1928, %v1924
    %v2025 = vpack.c.bf16 %v1933, %v1929
    %v2026 = vpack.c.bf16 %v1934, %v1930
    %v2027 = vpack.c.bf16 %v1935, %v1931
    %v2028 = vpack.c.bf16 %v1936, %v1932
    %v2029 = vpack.c.bf16 %v1941, %v1937
    %v2030 = vpack.c.bf16 %v1942, %v1938
    %v2031 = vpack.c.bf16 %v1943, %v1939
    %v2032 = vpack.c.bf16 %v1944, %v1940
    %v2033 = vpack.c.bf16 %v1949, %v1945
    %v2034 = vpack.c.bf16 %v1950, %v1946
    %v2035 = vpack.c.bf16 %v1951, %v1947
    %v2036 = vpack.c.bf16 %v1952, %v1948
    %v2037 = vpack.c.bf16 %v1957, %v1953
    %v2038 = vpack.c.bf16 %v1958, %v1954
    %v2039 = vpack.c.bf16 %v1959, %v1955
    %v2040 = vpack.c.bf16 %v1960, %v1956
    %v2041 = vpack.c.bf16 %v1965, %v1961
    %v2042 = vpack.c.bf16 %v1966, %v1962
    %v2043 = vpack.c.bf16 %v1967, %v1963
    %v2044 = vpack.c.bf16 %v1968, %v1964
    %v2045 = vpack.c.bf16 %v1973, %v1969
    %v2046 = vpack.c.bf16 %v1974, %v1970
    %v2047 = vpack.c.bf16 %v1975, %v1971
    %v2048 = vpack.c.bf16 %v1976, %v1972
    %v2049 = vpack.c.bf16 %v1981, %v1977
    %v2050 = vpack.c.bf16 %v1982, %v1978
    %v2051 = vpack.c.bf16 %v1983, %v1979
    %v2052 = vpack.c.bf16 %v1984, %v1980
    %v2053 = vpack.c.bf16 %v1989, %v1985
    %v2054 = vpack.c.bf16 %v1990, %v1986
    %v2055 = vpack.c.bf16 %v1991, %v1987
    %v2056 = vpack.c.bf16 %v1992, %v1988
    %v2057 = vld [vmem:[%s9] sm:$0xf]
    %v2058 = vld [vmem:[%s9 + $0x4] sm:$0xf]
    %v2059 = vld [vmem:[%s9 + $0x8] sm:$0xf]
    %v2060 = vld [vmem:[%s9 + $0xc] sm:$0xf]
    %v2061 = vld [vmem:[%s9 + $0x10] sm:$0xf]
    %v2062 = vld [vmem:[%s9 + $0x14] sm:$0xf]
    %v2063 = vld [vmem:[%s9 + $0x18] sm:$0xf]
    %v2064 = vld [vmem:[%s9 + $0x1c] sm:$0xf]
    %v2065 = vld [vmem:[%s9 + $0x20] sm:$0xf]
    %v2066 = vld [vmem:[%s9 + $0x24] sm:$0xf]
    %v2067 = vld [vmem:[%s9 + $0x28] sm:$0xf]
    %v2068 = vld [vmem:[%s9 + $0x2c] sm:$0xf]
    %v2069 = vld [vmem:[%s9 + $0x30] sm:$0xf]
    %v2070 = vld [vmem:[%s9 + $0x34] sm:$0xf]
    %v2071 = vld [vmem:[%s9 + $0x38] sm:$0xf]
    %v2072 = vld [vmem:[%s9 + $0x3c] sm:$0xf]
    %v2073 = vld [vmem:[%s9 + $0x40] sm:$0xf]
    %v2074 = vld [vmem:[%s9 + $0x44] sm:$0xf]
    %v2075 = vld [vmem:[%s9 + $0x48] sm:$0xf]
    %v2076 = vld [vmem:[%s9 + $0x4c] sm:$0xf]
    %v2077 = vld [vmem:[%s9 + $0x50] sm:$0xf]
    %v2078 = vld [vmem:[%s9 + $0x54] sm:$0xf]
    %v2079 = vld [vmem:[%s9 + $0x58] sm:$0xf]
    %v2080 = vld [vmem:[%s9 + $0x5c] sm:$0xf]
    %v2081 = vld [vmem:[%s9 + $0x60] sm:$0xf]
    %v2082 = vld [vmem:[%s9 + $0x64] sm:$0xf]
    %v2083 = vld [vmem:[%s9 + $0x68] sm:$0xf]
    %v2084 = vld [vmem:[%s9 + $0x6c] sm:$0xf]
    %v2085 = vld [vmem:[%s9 + $0x70] sm:$0xf]
    %v2086 = vld [vmem:[%s9 + $0x74] sm:$0xf]
    %v2087 = vld [vmem:[%s9 + $0x78] sm:$0xf]
    %v2088 = vld [vmem:[%s9 + $0x7c] sm:$0xf]
    %v2089 = vld [vmem:[%s9 + $0x80] sm:$0xf]
    %v2090 = vld [vmem:[%s9 + $0x84] sm:$0xf]
    %v2091 = vld [vmem:[%s9 + $0x88] sm:$0xf]
    %v2092 = vld [vmem:[%s9 + $0x8c] sm:$0xf]
    %v2093 = vld [vmem:[%s9 + $0x90] sm:$0xf]
    %v2094 = vld [vmem:[%s9 + $0x94] sm:$0xf]
    %v2095 = vld [vmem:[%s9 + $0x98] sm:$0xf]
    %v2096 = vld [vmem:[%s9 + $0x9c] sm:$0xf]
    %v2097 = vld [vmem:[%s9 + $0xa0] sm:$0xf]
    %v2098 = vld [vmem:[%s9 + $0xa4] sm:$0xf]
    %v2099 = vld [vmem:[%s9 + $0xa8] sm:$0xf]
    %v2100 = vld [vmem:[%s9 + $0xac] sm:$0xf]
    %v2101 = vld [vmem:[%s9 + $0xb0] sm:$0xf]
    %v2102 = vld [vmem:[%s9 + $0xb4] sm:$0xf]
    %v2103 = vld [vmem:[%s9 + $0xb8] sm:$0xf]
    %v2104 = vld [vmem:[%s9 + $0xbc] sm:$0xf]
    %v2105 = vld [vmem:[%s9 + $0xc0] sm:$0xf]
    %v2106 = vld [vmem:[%s9 + $0xc4] sm:$0xf]
    %v2107 = vld [vmem:[%s9 + $0xc8] sm:$0xf]
    %v2108 = vld [vmem:[%s9 + $0xcc] sm:$0xf]
    %v2109 = vld [vmem:[%s9 + $0xd0] sm:$0xf]
    %v2110 = vld [vmem:[%s9 + $0xd4] sm:$0xf]
    %v2111 = vld [vmem:[%s9 + $0xd8] sm:$0xf]
    %v2112 = vld [vmem:[%s9 + $0xdc] sm:$0xf]
    %v2113 = vld [vmem:[%s9 + $0xe0] sm:$0xf]
    %v2114 = vld [vmem:[%s9 + $0xe4] sm:$0xf]
    %v2115 = vld [vmem:[%s9 + $0xe8] sm:$0xf]
    %v2116 = vld [vmem:[%s9 + $0xec] sm:$0xf]
    %v2117 = vld [vmem:[%s9 + $0xf0] sm:$0xf]
    %v2118 = vld [vmem:[%s9 + $0xf4] sm:$0xf]
    %v2119 = vld [vmem:[%s9 + $0xf8] sm:$0xf]
    %v2120 = vld [vmem:[%s9 + $0xfc] sm:$0xf]
    %v2121 = vld [vmem:[%s10] sm:$0x1]
    %v2123 = vlaneseq
    %v2124 = vshrl.u32 %v2123, 7
    %v2125 = vsub.s32 0, %v2124
    %v2126 = vrot.slane %v2121, %v2125
    %v2192 = vunpack.c.l.b16 %v2057
    %v2193 = vunpack.c.l.b16 %v2058
    %v2194 = vunpack.c.l.b16 %v2059
    %v2195 = vunpack.c.l.b16 %v2060
    %v2196 = vunpack.c.l.b16 %v2061
    %v2197 = vunpack.c.l.b16 %v2062
    %v2198 = vunpack.c.l.b16 %v2063
    %v2199 = vunpack.c.l.b16 %v2064
    %v2200 = vunpack.c.l.b16 %v2065
    %v2201 = vunpack.c.l.b16 %v2066
    %v2202 = vunpack.c.l.b16 %v2067
    %v2203 = vunpack.c.l.b16 %v2068
    %v2204 = vunpack.c.l.b16 %v2069
    %v2205 = vunpack.c.l.b16 %v2070
    %v2206 = vunpack.c.l.b16 %v2071
    %v2207 = vunpack.c.l.b16 %v2072
    %v2208 = vunpack.c.l.b16 %v2073
    %v2209 = vunpack.c.l.b16 %v2074
    %v2210 = vunpack.c.l.b16 %v2075
    %v2211 = vunpack.c.l.b16 %v2076
    %v2212 = vunpack.c.l.b16 %v2077
    %v2213 = vunpack.c.l.b16 %v2078
    %v2214 = vunpack.c.l.b16 %v2079
    %v2215 = vunpack.c.l.b16 %v2080
    %v2216 = vunpack.c.l.b16 %v2081
    %v2217 = vunpack.c.l.b16 %v2082
    %v2218 = vunpack.c.l.b16 %v2083
    %v2219 = vunpack.c.l.b16 %v2084
    %v2220 = vunpack.c.l.b16 %v2085
    %v2221 = vunpack.c.l.b16 %v2086
    %v2222 = vunpack.c.l.b16 %v2087
    %v2223 = vunpack.c.l.b16 %v2088
    %v2224 = vunpack.c.l.b16 %v2089
    %v2225 = vunpack.c.l.b16 %v2090
    %v2226 = vunpack.c.l.b16 %v2091
    %v2227 = vunpack.c.l.b16 %v2092
    %v2228 = vunpack.c.l.b16 %v2093
    %v2229 = vunpack.c.l.b16 %v2094
    %v2230 = vunpack.c.l.b16 %v2095
    %v2231 = vunpack.c.l.b16 %v2096
    %v2232 = vunpack.c.l.b16 %v2097
    %v2233 = vunpack.c.l.b16 %v2098
    %v2234 = vunpack.c.l.b16 %v2099
    %v2235 = vunpack.c.l.b16 %v2100
    %v2236 = vunpack.c.l.b16 %v2101
    %v2237 = vunpack.c.l.b16 %v2102
    %v2238 = vunpack.c.l.b16 %v2103
    %v2239 = vunpack.c.l.b16 %v2104
    %v2240 = vunpack.c.l.b16 %v2105
    %v2241 = vunpack.c.l.b16 %v2106
    %v2242 = vunpack.c.l.b16 %v2107
    %v2243 = vunpack.c.l.b16 %v2108
    %v2244 = vunpack.c.l.b16 %v2109
    %v2245 = vunpack.c.l.b16 %v2110
    %v2246 = vunpack.c.l.b16 %v2111
    %v2247 = vunpack.c.l.b16 %v2112
    %v2248 = vunpack.c.l.b16 %v2113
    %v2249 = vunpack.c.l.b16 %v2114
    %v2250 = vunpack.c.l.b16 %v2115
    %v2251 = vunpack.c.l.b16 %v2116
    %v2252 = vunpack.c.l.b16 %v2117
    %v2253 = vunpack.c.l.b16 %v2118
    %v2254 = vunpack.c.l.b16 %v2119
    %v2255 = vunpack.c.l.b16 %v2120
    %v2256 = vpack.c.b16 %v2193, %v2192
    %v2257 = vpack.c.b16 %v2195, %v2194
    %v2258 = vpack.c.b16 %v2197, %v2196
    %v2259 = vpack.c.b16 %v2199, %v2198
    %v2260 = vpack.c.b16 %v2201, %v2200
    %v2261 = vpack.c.b16 %v2203, %v2202
    %v2262 = vpack.c.b16 %v2205, %v2204
    %v2263 = vpack.c.b16 %v2207, %v2206
    %v2264 = vpack.c.b16 %v2209, %v2208
    %v2265 = vpack.c.b16 %v2211, %v2210
    %v2266 = vpack.c.b16 %v2213, %v2212
    %v2267 = vpack.c.b16 %v2215, %v2214
    %v2268 = vpack.c.b16 %v2217, %v2216
    %v2269 = vpack.c.b16 %v2219, %v2218
    %v2270 = vpack.c.b16 %v2221, %v2220
    %v2271 = vpack.c.b16 %v2223, %v2222
    %v2272 = vpack.c.b16 %v2225, %v2224
    %v2273 = vpack.c.b16 %v2227, %v2226
    %v2274 = vpack.c.b16 %v2229, %v2228
    %v2275 = vpack.c.b16 %v2231, %v2230
    %v2276 = vpack.c.b16 %v2233, %v2232
    %v2277 = vpack.c.b16 %v2235, %v2234
    %v2278 = vpack.c.b16 %v2237, %v2236
    %v2279 = vpack.c.b16 %v2239, %v2238
    %v2280 = vpack.c.b16 %v2241, %v2240
    %v2281 = vpack.c.b16 %v2243, %v2242
    %v2282 = vpack.c.b16 %v2245, %v2244
    %v2283 = vpack.c.b16 %v2247, %v2246
    %v2284 = vpack.c.b16 %v2249, %v2248
    %v2285 = vpack.c.b16 %v2251, %v2250
    %v2286 = vpack.c.b16 %v2253, %v2252
    %v2287 = vpack.c.b16 %v2255, %v2254
    %2320 = vmatprep.subr.bf16.mxu0 0
    %2321 = vmatpush1.bf16.msra.mxu0 %v2256
    %2322 = vmatprep.subr.bf16.mxu0 0
    %2323 = vmatpush1.bf16.msra.mxu0 %v2257
    %2324 = vmatprep.subr.bf16.mxu0 0
    %2325 = vmatpush1.bf16.msra.mxu0 %v2258
    %2326 = vmatprep.subr.bf16.mxu0 0
    %2327 = vmatpush1.bf16.msra.mxu0 %v2259
    %2328 = vmatprep.subr.bf16.mxu0 0
    %2329 = vmatpush1.bf16.msra.mxu0 %v2260
    %2330 = vmatprep.subr.bf16.mxu0 0
    %2331 = vmatpush1.bf16.msra.mxu0 %v2261
    %2332 = vmatprep.subr.bf16.mxu0 0
    %2333 = vmatpush1.bf16.msra.mxu0 %v2262
    %2334 = vmatprep.subr.bf16.mxu0 0
    %2335 = vmatpush1.bf16.msra.mxu0 %v2263
    %2336 = vmatprep.subr.bf16.mxu0 0
    %2337 = vmatpush1.bf16.msra.mxu0 %v2264
    %2338 = vmatprep.subr.bf16.mxu0 0
    %2339 = vmatpush1.bf16.msra.mxu0 %v2265
    %2340 = vmatprep.subr.bf16.mxu0 0
    %2341 = vmatpush1.bf16.msra.mxu0 %v2266
    %2342 = vmatprep.subr.bf16.mxu0 0
    %2343 = vmatpush1.bf16.msra.mxu0 %v2267
    %2344 = vmatprep.subr.bf16.mxu0 0
    %2345 = vmatpush1.bf16.msra.mxu0 %v2268
    %2346 = vmatprep.subr.bf16.mxu0 0
    %2347 = vmatpush1.bf16.msra.mxu0 %v2269
    %2348 = vmatprep.subr.bf16.mxu0 0
    %2349 = vmatpush1.bf16.msra.mxu0 %v2270
    %2350 = vmatprep.subr.bf16.mxu0 0
    %2351 = vmatpush1.bf16.msra.mxu0 %v2271
    %2352 = vmatprep.mubr.bf16.mxu0 %v1994
    %2353 = vmatmul.mubr.bf16.gmra.mrb[0].mxu0 %v1993
    %v2354 = vpop.f32.mrb[0].mxu0
    %v2355 = vadd.f32 %v2126, %v2354
    %v2356 = vpop.f32.mrb[0].mxu0
    %v2357 = vpop.f32.mrb[0].mxu0
    %v2358 = vadd.f32 %v2126, %v2357
    %v2359 = vpop.f32.mrb[0].mxu0
    %2360 = vmatprep.mubr.bf16.mxu0 %v1998
    %2361 = vmatmul.mubr.bf16.gmra.mrb[0].mxu0 %v1997
    %v2362 = vpop.f32.mrb[0].mxu0
    %v2363 = vadd.f32 %v2126, %v2362
    %v2364 = vpop.f32.mrb[0].mxu0
    %v2365 = vpop.f32.mrb[0].mxu0
    %v2366 = vadd.f32 %v2126, %v2365
    %v2367 = vpop.f32.mrb[0].mxu0
    %2368 = vmatprep.mubr.bf16.mxu0 %v2002
    %2369 = vmatmul.mubr.bf16.gmra.mrb[0].mxu0 %v2001
    %v2370 = vpop.f32.mrb[0].mxu0
    %v2371 = vadd.f32 %v2126, %v2370
    %v2372 = vpop.f32.mrb[0].mxu0
    %v2373 = vpop.f32.mrb[0].mxu0
    %v2374 = vadd.f32 %v2126, %v2373
    %v2375 = vpop.f32.mrb[0].mxu0
    %2376 = vmatprep.mubr.bf16.mxu0 %v2006
    %2377 = vmatmul.mubr.bf16.gmra.mrb[0].mxu0 %v2005
    %v2378 = vpop.f32.mrb[0].mxu0
    %v2379 = vadd.f32 %v2126, %v2378
    %v2380 = vpop.f32.mrb[0].mxu0
    %v2381 = vpop.f32.mrb[0].mxu0
    %v2382 = vadd.f32 %v2126, %v2381
    %v2383 = vpop.f32.mrb[0].mxu0
    %2384 = vmatprep.mubr.bf16.mxu0 %v2010
    %2385 = vmatmul.mubr.bf16.gmra.mrb[0].mxu0 %v2009
    %v2386 = vpop.f32.mrb[0].mxu0
    %v2387 = vadd.f32 %v2126, %v2386
    %v2388 = vpop.f32.mrb[0].mxu0
    %v2389 = vpop.f32.mrb[0].mxu0
    %v2390 = vadd.f32 %v2126, %v2389
    %v2391 = vpop.f32.mrb[0].mxu0
    %2392 = vmatprep.mubr.bf16.mxu0 %v2014
    %2393 = vmatmul.mubr.bf16.gmra.mrb[0].mxu0 %v2013
    %v2394 = vpop.f32.mrb[0].mxu0
    %v2395 = vadd.f32 %v2126, %v2394
    %v2396 = vpop.f32.mrb[0].mxu0
    %v2397 = vpop.f32.mrb[0].mxu0
    %v2398 = vadd.f32 %v2126, %v2397
    %v2399 = vpop.f32.mrb[0].mxu0
    %2400 = vmatprep.mubr.bf16.mxu0 %v2018
    %2401 = vmatmul.mubr.bf16.gmra.mrb[0].mxu0 %v2017
    %v2402 = vpop.f32.mrb[0].mxu0
    %v2403 = vadd.f32 %v2126, %v2402
    %v2404 = vpop.f32.mrb[0].mxu0
    %v2405 = vpop.f32.mrb[0].mxu0
    %v2406 = vadd.f32 %v2126, %v2405
    %v2407 = vpop.f32.mrb[0].mxu0
    %2408 = vmatprep.mubr.bf16.mxu0 %v2022
    %2409 = vmatmul.mubr.bf16.gmra.mrb[0].mxu0 %v2021
    %v2410 = vpop.f32.mrb[0].mxu0
    %v2411 = vadd.f32 %v2126, %v2410
    %v2412 = vpop.f32.mrb[0].mxu0
    %v2413 = vpop.f32.mrb[0].mxu0
    %v2414 = vadd.f32 %v2126, %v2413
    %v2415 = vpop.f32.mrb[0].mxu0
    %2416 = vmatprep.mubr.bf16.mxu0 %v2026
    %2417 = vmatmul.mubr.bf16.gmra.mrb[0].mxu0 %v2025
    %v2418 = vpop.f32.mrb[0].mxu0
    %v2419 = vadd.f32 %v2126, %v2418
    %v2420 = vpop.f32.mrb[0].mxu0
    %v2421 = vpop.f32.mrb[0].mxu0
    %v2422 = vadd.f32 %v2126, %v2421
    %v2423 = vpop.f32.mrb[0].mxu0
    %2424 = vmatprep.mubr.bf16.mxu0 %v2030
    %2425 = vmatmul.mubr.bf16.gmra.mrb[0].mxu0 %v2029
    %v2426 = vpop.f32.mrb[0].mxu0
    %v2427 = vadd.f32 %v2126, %v2426
    %v2428 = vpop.f32.mrb[0].mxu0
    %v2429 = vpop.f32.mrb[0].mxu0
    %v2430 = vadd.f32 %v2126, %v2429
    %v2431 = vpop.f32.mrb[0].mxu0
    %2432 = vmatprep.mubr.bf16.mxu0 %v2034
    %2433 = vmatmul.mubr.bf16.gmra.mrb[0].mxu0 %v2033
    %v2434 = vpop.f32.mrb[0].mxu0
    %v2435 = vadd.f32 %v2126, %v2434
    %v2436 = vpop.f32.mrb[0].mxu0
    %v2437 = vpop.f32.mrb[0].mxu0
    %v2438 = vadd.f32 %v2126, %v2437
    %v2439 = vpop.f32.mrb[0].mxu0
    %2440 = vmatprep.mubr.bf16.mxu0 %v2038
    %2441 = vmatmul.mubr.bf16.gmra.mrb[0].mxu0 %v2037
    %v2442 = vpop.f32.mrb[0].mxu0
    %v2443 = vadd.f32 %v2126, %v2442
    %v2444 = vpop.f32.mrb[0].mxu0
    %v2445 = vpop.f32.mrb[0].mxu0
    %v2446 = vadd.f32 %v2126, %v2445
    %v2447 = vpop.f32.mrb[0].mxu0
    %2448 = vmatprep.mubr.bf16.mxu0 %v2042
    %2449 = vmatmul.mubr.bf16.gmra.mrb[0].mxu0 %v2041
    %v2450 = vpop.f32.mrb[0].mxu0
    %v2451 = vadd.f32 %v2126, %v2450
    %v2452 = vpop.f32.mrb[0].mxu0
    %v2453 = vpop.f32.mrb[0].mxu0
    %v2454 = vadd.f32 %v2126, %v2453
    %v2455 = vpop.f32.mrb[0].mxu0
    %2456 = vmatprep.mubr.bf16.mxu0 %v2046
    %2457 = vmatmul.mubr.bf16.gmra.mrb[0].mxu0 %v2045
    %v2458 = vpop.f32.mrb[0].mxu0
    %v2459 = vadd.f32 %v2126, %v2458
    %v2460 = vpop.f32.mrb[0].mxu0
    %v2461 = vpop.f32.mrb[0].mxu0
    %v2462 = vadd.f32 %v2126, %v2461
    %v2463 = vpop.f32.mrb[0].mxu0
    %2464 = vmatprep.mubr.bf16.mxu0 %v2050
    %2465 = vmatmul.mubr.bf16.gmra.mrb[0].mxu0 %v2049
    %v2466 = vpop.f32.mrb[0].mxu0
    %v2467 = vadd.f32 %v2126, %v2466
    %v2468 = vpop.f32.mrb[0].mxu0
    %v2469 = vpop.f32.mrb[0].mxu0
    %v2470 = vadd.f32 %v2126, %v2469
    %v2471 = vpop.f32.mrb[0].mxu0
    %2472 = vmatprep.mubr.bf16.mxu0 %v2054
    %2473 = vmatmul.mubr.bf16.gmra.mrb[0].mxu0 %v2053
    %v2474 = vpop.f32.mrb[0].mxu0
    %v2475 = vadd.f32 %v2126, %v2474
    %v2476 = vpop.f32.mrb[0].mxu0
    %v2477 = vpop.f32.mrb[0].mxu0
    %v2478 = vadd.f32 %v2126, %v2477
    %v2479 = vpop.f32.mrb[0].mxu0
    %2480 = vdwg.mxu0
    %2481 = vmatprep.subr.bf16.mxu0 0
    %2482 = vmatpush1.bf16.msra.mxu0 %v2272
    %2483 = vmatprep.subr.bf16.mxu0 0
    %2484 = vmatpush1.bf16.msra.mxu0 %v2273
    %2485 = vmatprep.subr.bf16.mxu0 0
    %2486 = vmatpush1.bf16.msra.mxu0 %v2274
    %2487 = vmatprep.subr.bf16.mxu0 0
    %2488 = vmatpush1.bf16.msra.mxu0 %v2275
    %2489 = vmatprep.subr.bf16.mxu0 0
    %2490 = vmatpush1.bf16.msra.mxu0 %v2276
    %2491 = vmatprep.subr.bf16.mxu0 0
    %2492 = vmatpush1.bf16.msra.mxu0 %v2277
    %2493 = vmatprep.subr.bf16.mxu0 0
    %2494 = vmatpush1.bf16.msra.mxu0 %v2278
    %2495 = vmatprep.subr.bf16.mxu0 0
    %2496 = vmatpush1.bf16.msra.mxu0 %v2279
    %2497 = vmatprep.subr.bf16.mxu0 0
    %2498 = vmatpush1.bf16.msra.mxu0 %v2280
    %2499 = vmatprep.subr.bf16.mxu0 0
    %2500 = vmatpush1.bf16.msra.mxu0 %v2281
    %2501 = vmatprep.subr.bf16.mxu0 0
    %2502 = vmatpush1.bf16.msra.mxu0 %v2282
    %2503 = vmatprep.subr.bf16.mxu0 0
    %2504 = vmatpush1.bf16.msra.mxu0 %v2283
    %2505 = vmatprep.subr.bf16.mxu0 0
    %2506 = vmatpush1.bf16.msra.mxu0 %v2284
    %2507 = vmatprep.subr.bf16.mxu0 0
    %2508 = vmatpush1.bf16.msra.mxu0 %v2285
    %2509 = vmatprep.subr.bf16.mxu0 0
    %2510 = vmatpush1.bf16.msra.mxu0 %v2286
    %2511 = vmatprep.subr.bf16.mxu0 0
    %2512 = vmatpush1.bf16.msra.mxu0 %v2287
    %2513 = vmatprep.mubr.bf16.mxu0 %v1996
    %2514 = vmatmul.mubr.bf16.gmra.mrb[0].mxu0 %v1995
    %v2515 = vpop.f32.mrb[0].mxu0
    %v2516 = vadd.f32 %v2355, %v2515
    %v2517 = vpop.f32.mrb[0].mxu0
    %v2518 = vpop.f32.mrb[0].mxu0
    %v2519 = vadd.f32 %v2358, %v2518
    %v2520 = vpop.f32.mrb[0].mxu0
    %2521 = vmatprep.mubr.bf16.mxu0 %v2000
    %2522 = vmatmul.mubr.bf16.gmra.mrb[0].mxu0 %v1999
    %v2523 = vpop.f32.mrb[0].mxu0
    %v2524 = vadd.f32 %v2363, %v2523
    %v2525 = vpop.f32.mrb[0].mxu0
    %v2526 = vpop.f32.mrb[0].mxu0
    %v2527 = vadd.f32 %v2366, %v2526
    %v2528 = vpop.f32.mrb[0].mxu0
    %2529 = vmatprep.mubr.bf16.mxu0 %v2004
    %2530 = vmatmul.mubr.bf16.gmra.mrb[0].mxu0 %v2003
    %v2531 = vpop.f32.mrb[0].mxu0
    %v2532 = vadd.f32 %v2371, %v2531
    %v2533 = vpop.f32.mrb[0].mxu0
    %v2534 = vpop.f32.mrb[0].mxu0
    %v2535 = vadd.f32 %v2374, %v2534
    %v2536 = vpop.f32.mrb[0].mxu0
    %2537 = vmatprep.mubr.bf16.mxu0 %v2008
    %2538 = vmatmul.mubr.bf16.gmra.mrb[0].mxu0 %v2007
    %v2539 = vpop.f32.mrb[0].mxu0
    %v2540 = vadd.f32 %v2379, %v2539
    %v2541 = vpop.f32.mrb[0].mxu0
    %v2542 = vpop.f32.mrb[0].mxu0
    %v2543 = vadd.f32 %v2382, %v2542
    %v2544 = vpop.f32.mrb[0].mxu0
    %2545 = vmatprep.mubr.bf16.mxu0 %v2012
    %2546 = vmatmul.mubr.bf16.gmra.mrb[0].mxu0 %v2011
    %v2547 = vpop.f32.mrb[0].mxu0
    %v2548 = vadd.f32 %v2387, %v2547
    %v2549 = vpop.f32.mrb[0].mxu0
    %v2550 = vpop.f32.mrb[0].mxu0
    %v2551 = vadd.f32 %v2390, %v2550
    %v2552 = vpop.f32.mrb[0].mxu0
    %2553 = vmatprep.mubr.bf16.mxu0 %v2016
    %2554 = vmatmul.mubr.bf16.gmra.mrb[0].mxu0 %v2015
    %v2555 = vpop.f32.mrb[0].mxu0
    %v2556 = vadd.f32 %v2395, %v2555
    %v2557 = vpop.f32.mrb[0].mxu0
    %v2558 = vpop.f32.mrb[0].mxu0
    %v2559 = vadd.f32 %v2398, %v2558
    %v2560 = vpop.f32.mrb[0].mxu0
    %2561 = vmatprep.mubr.bf16.mxu0 %v2020
    %2562 = vmatmul.mubr.bf16.gmra.mrb[0].mxu0 %v2019
    %v2563 = vpop.f32.mrb[0].mxu0
    %v2564 = vadd.f32 %v2403, %v2563
    %v2565 = vpop.f32.mrb[0].mxu0
    %v2566 = vpop.f32.mrb[0].mxu0
    %v2567 = vadd.f32 %v2406, %v2566
    %v2568 = vpop.f32.mrb[0].mxu0
    %2569 = vmatprep.mubr.bf16.mxu0 %v2024
    %2570 = vmatmul.mubr.bf16.gmra.mrb[0].mxu0 %v2023
    %v2571 = vpop.f32.mrb[0].mxu0
    %v2572 = vadd.f32 %v2411, %v2571
    %v2573 = vpop.f32.mrb[0].mxu0
    %v2574 = vpop.f32.mrb[0].mxu0
    %v2575 = vadd.f32 %v2414, %v2574
    %v2576 = vpop.f32.mrb[0].mxu0
    %2577 = vmatprep.mubr.bf16.mxu0 %v2028
    %2578 = vmatmul.mubr.bf16.gmra.mrb[0].mxu0 %v2027
    %v2579 = vpop.f32.mrb[0].mxu0
    %v2580 = vadd.f32 %v2419, %v2579
    %v2581 = vpop.f32.mrb[0].mxu0
    %v2582 = vpop.f32.mrb[0].mxu0
    %v2583 = vadd.f32 %v2422, %v2582
    %v2584 = vpop.f32.mrb[0].mxu0
    %2585 = vmatprep.mubr.bf16.mxu0 %v2032
    %2586 = vmatmul.mubr.bf16.gmra.mrb[0].mxu0 %v2031
    %v2587 = vpop.f32.mrb[0].mxu0
    %v2588 = vadd.f32 %v2427, %v2587
    %v2589 = vpop.f32.mrb[0].mxu0
    %v2590 = vpop.f32.mrb[0].mxu0
    %v2591 = vadd.f32 %v2430, %v2590
    %v2592 = vpop.f32.mrb[0].mxu0
    %2593 = vmatprep.mubr.bf16.mxu0 %v2036
    %2594 = vmatmul.mubr.bf16.gmra.mrb[0].mxu0 %v2035
    %v2595 = vpop.f32.mrb[0].mxu0
    %v2596 = vadd.f32 %v2435, %v2595
    %v2597 = vpop.f32.mrb[0].mxu0
    %v2598 = vpop.f32.mrb[0].mxu0
    %v2599 = vadd.f32 %v2438, %v2598
    %v2600 = vpop.f32.mrb[0].mxu0
    %2601 = vmatprep.mubr.bf16.mxu0 %v2040
    %2602 = vmatmul.mubr.bf16.gmra.mrb[0].mxu0 %v2039
    %v2603 = vpop.f32.mrb[0].mxu0
    %v2604 = vadd.f32 %v2443, %v2603
    %v2605 = vpop.f32.mrb[0].mxu0
    %v2606 = vpop.f32.mrb[0].mxu0
    %v2607 = vadd.f32 %v2446, %v2606
    %v2608 = vpop.f32.mrb[0].mxu0
    %2609 = vmatprep.mubr.bf16.mxu0 %v2044
    %2610 = vmatmul.mubr.bf16.gmra.mrb[0].mxu0 %v2043
    %v2611 = vpop.f32.mrb[0].mxu0
    %v2612 = vadd.f32 %v2451, %v2611
    %v2613 = vpop.f32.mrb[0].mxu0
    %v2614 = vpop.f32.mrb[0].mxu0
    %v2615 = vadd.f32 %v2454, %v2614
    %v2616 = vpop.f32.mrb[0].mxu0
    %2617 = vmatprep.mubr.bf16.mxu0 %v2048
    %2618 = vmatmul.mubr.bf16.gmra.mrb[0].mxu0 %v2047
    %v2619 = vpop.f32.mrb[0].mxu0
    %v2620 = vadd.f32 %v2459, %v2619
    %v2621 = vpop.f32.mrb[0].mxu0
    %v2622 = vpop.f32.mrb[0].mxu0
    %v2623 = vadd.f32 %v2462, %v2622
    %v2624 = vpop.f32.mrb[0].mxu0
    %2625 = vmatprep.mubr.bf16.mxu0 %v2052
    %2626 = vmatmul.mubr.bf16.gmra.mrb[0].mxu0 %v2051
    %v2627 = vpop.f32.mrb[0].mxu0
    %v2628 = vadd.f32 %v2467, %v2627
    %v2629 = vpop.f32.mrb[0].mxu0
    %v2630 = vpop.f32.mrb[0].mxu0
    %v2631 = vadd.f32 %v2470, %v2630
    %v2632 = vpop.f32.mrb[0].mxu0
    %2633 = vmatprep.mubr.bf16.mxu0 %v2056
    %2634 = vmatmul.mubr.bf16.gmra.mrb[0].mxu0 %v2055
    %v2635 = vpop.f32.mrb[0].mxu0
    %v2636 = vadd.f32 %v2475, %v2635
    %v2637 = vpop.f32.mrb[0].mxu0
    %v2638 = vpop.f32.mrb[0].mxu0
    %v2639 = vadd.f32 %v2478, %v2638
    %v2640 = vpop.f32.mrb[0].mxu0
    %2641 = vdwg.mxu0
    %2642 = vst [vmem:[%s11] sm:$0xff] %v2516
    %2643 = vst [vmem:[%s11 + $0x8] sm:$0xff] %v2519
    %2644 = vst [vmem:[%s11 + $0x10] sm:$0xff] %v2524
    %2645 = vst [vmem:[%s11 + $0x18] sm:$0xff] %v2527
    %2646 = vst [vmem:[%s11 + $0x20] sm:$0xff] %v2532
    %2647 = vst [vmem:[%s11 + $0x28] sm:$0xff] %v2535
    %2648 = vst [vmem:[%s11 + $0x30] sm:$0xff] %v2540
    %2649 = vst [vmem:[%s11 + $0x38] sm:$0xff] %v2543
    %2650 = vst [vmem:[%s11 + $0x40] sm:$0xff] %v2548
    %2651 = vst [vmem:[%s11 + $0x48] sm:$0xff] %v2551
    %2652 = vst [vmem:[%s11 + $0x50] sm:$0xff] %v2556
    %2653 = vst [vmem:[%s11 + $0x58] sm:$0xff] %v2559
    %2654 = vst [vmem:[%s11 + $0x60] sm:$0xff] %v2564
    %2655 = vst [vmem:[%s11 + $0x68] sm:$0xff] %v2567
    %2656 = vst [vmem:[%s11 + $0x70] sm:$0xff] %v2572
    %2657 = vst [vmem:[%s11 + $0x78] sm:$0xff] %v2575
    %2658 = vst [vmem:[%s11 + $0x80] sm:$0xff] %v2580
    %2659 = vst [vmem:[%s11 + $0x88] sm:$0xff] %v2583
    %2660 = vst [vmem:[%s11 + $0x90] sm:$0xff] %v2588
    %2661 = vst [vmem:[%s11 + $0x98] sm:$0xff] %v2591
    %2662 = vst [vmem:[%s11 + $0xa0] sm:$0xff] %v2596
    %2663 = vst [vmem:[%s11 + $0xa8] sm:$0xff] %v2599
    %2664 = vst [vmem:[%s11 + $0xb0] sm:$0xff] %v2604
    %2665 = vst [vmem:[%s11 + $0xb8] sm:$0xff] %v2607
    %2666 = vst [vmem:[%s11 + $0xc0] sm:$0xff] %v2612
    %2667 = vst [vmem:[%s11 + $0xc8] sm:$0xff] %v2615
    %2668 = vst [vmem:[%s11 + $0xd0] sm:$0xff] %v2620
    %2669 = vst [vmem:[%s11 + $0xd8] sm:$0xff] %v2623
    %2670 = vst [vmem:[%s11 + $0xe0] sm:$0xff] %v2628
    %2671 = vst [vmem:[%s11 + $0xe8] sm:$0xff] %v2631
    %2672 = vst [vmem:[%s11 + $0xf0] sm:$0xff] %v2636
    %2673 = vst [vmem:[%s11 + $0xf8] sm:$0xff] %v2639
    // Predicated region
    $region54: #{dqn_forward.1} parent=1 // pred_check
      _
    $region55: #{dqn_forward.1} parent=1 // pred_check_branch
      %2675 = sbr.rel (0) target = $region57
    $region56: #{dqn_forward.1} parent=1 // pred_region
      _
    $region57: #{dqn_forward.1} parent=1 // pred_fallthru
      _
    // Predicated region
    $region58: #{dqn_forward.1} parent=1 // pred_check
      _
    $region59: #{dqn_forward.1} parent=1 // pred_check_branch
      %2677 = sbr.rel (0) target = $region61
    $region60: #{dqn_forward.1} parent=1 // pred_region
      _
    $region61: #{dqn_forward.1} parent=1 // pred_fallthru
      _
    %2678 = vsyncpa [#allocation3], 1
    %2679 = vsyncpa [#allocation5], 1

</llo_original>
